<compile_context>
chip_gen: v7x
topology: tpu7x:2x2x1
jax: 0.10.0
libtpu: 0.0.40
codegen_flags: <defaults>
</compile_context>

<pallas_src>
import jax
import jax.numpy as jnp
from jax.experimental import pallas as pl
from jax.experimental.pallas import tpu as pltpu

_BT = 8      # batch rows per grid step = one sublane group
_LANE = 128  # TPU lane width


def _round_up(x, m):
    return ((x + m - 1) // m) * m


def _decoder_kernel(x_ref, wih_ref, whh_ref, b_ref, wout_ref, bout_ref,
                    y_ref, hall_scr):
    SB, _ = x_ref.shape                  # S*8 rows: 8-row batch groups, time-major
    Hp = whh_ref.shape[0]                # padded hidden width (multiple of 128)
    S = SB // _BT

    # ---- (1) Batched input projection for ALL time steps (one MXU pass) --------
    #      gx[t*8:(t+1)*8] = x_t @ W_ih^T + (b_ih + b_hh)   -- held in vregs, no slab.
    gx = (jnp.dot(x_ref[...], wih_ref[...], preferred_element_type=jnp.float32)
          + b_ref[...])

    # ---- (2) Serial LSTM recurrence, statically unrolled (S is small) ----------
    h = jnp.zeros((_BT, Hp), jnp.float32)    # nn.LSTM default h0 = c0 = 0
    c = jnp.zeros((_BT, Hp), jnp.float32)
    for t in range(S):
        # Loop-invariant RHS is read from VMEM; only the LHS stream depends on h,
        # so the weight push can overlap the previous step's elementwise work.
        gates = gx[t * _BT:(t + 1) * _BT, :] + jnp.dot(
            h, whh_ref[...], preferred_element_type=jnp.float32)
        # PyTorch gate order i, f, g, o; each slice is a lane-dense 128-wide tile.
        i_g = jax.nn.sigmoid(gates[:, 0 * Hp:1 * Hp])
        f_g = jax.nn.sigmoid(gates[:, 1 * Hp:2 * Hp])
        g_g = jnp.tanh(gates[:, 2 * Hp:3 * Hp])
        o_g = jax.nn.sigmoid(gates[:, 3 * Hp:4 * Hp])
        c = f_g * c + i_g * g_g
        h = o_g * jnp.tanh(c)
        hall_scr[t * _BT:(t + 1) * _BT, :] = h   # store is off the serial chain

    # ---- (3) Deferred output head: one matmul + one lane-dense unmasked store ---
    y = (jnp.dot(hall_scr[...], wout_ref[...], preferred_element_type=jnp.float32)
         + bout_ref[...])
    y_ref[...] = y.astype(y_ref.dtype)


def _pad_gate_cols(w, H, Hp):
    """(..., 4H) -> (..., 4Hp): each H-wide gate block placed at offset k*Hp, zero-fill."""
    pads = [(0, 0)] * (w.ndim - 1) + [(0, Hp - H)]
    return jnp.concatenate(
        [jnp.pad(w[..., k * H:(k + 1) * H], pads) for k in range(4)], axis=-1)


def decoder_forward(x_bsd, params):
    """x_bsd: (B, S, D_in) float32. Returns (B, S, D_out)."""
    wih_t, whh_t, b, wout_t, bout = params
    B, S, D_in = x_bsd.shape
    H = whh_t.shape[0]
    D_out = wout_t.shape[1]

    Hp = _round_up(H, _LANE)             # lane-dense gate tiles (review item 2b)
    Dp = _round_up(D_out, _LANE)         # lane-dense output store (review item 4)
    B_pad = _round_up(max(B, _BT), _BT)
    nbt = B_pad // _BT                   # batch tiles -> "parallel" grid axis

    # --- zero-pad parameters (exact: padded hidden units remain identically 0) ---
    wih_p = _pad_gate_cols(wih_t, H, Hp)                                   # (D_in, 4Hp)
    whh_p = jnp.zeros((Hp, 4 * Hp), jnp.float32).at[:H, :].set(
        _pad_gate_cols(whh_t, H, Hp))                                      # (Hp, 4Hp)
    b_p = _pad_gate_cols(b, H, Hp)                                         # (1, 4Hp)
    wout_p = jnp.zeros((Hp, Dp), jnp.float32).at[:H, :D_out].set(wout_t)   # (Hp, Dp)
    bout_p = jnp.zeros((1, Dp), jnp.float32).at[:, :D_out].set(bout)       # (1, Dp)

    # --- layout x: (B,S,D) -> (nbt, S*8, D), time-major within each batch tile ---
    x_pad = jnp.zeros((B_pad, S, D_in), jnp.float32).at[:B].set(x_bsd)
    x_tiled = (x_pad.reshape(nbt, _BT, S, D_in)
               .transpose(0, 2, 1, 3)
               .reshape(nbt, S * _BT, D_in))

    y_tiled = pl.pallas_call(
        _decoder_kernel,
        out_shape=jax.ShapeDtypeStruct((nbt, S * _BT, Dp), jnp.float32),
        grid_spec=pltpu.PrefetchScalarGridSpec(
            num_scalar_prefetch=0,
            grid=(nbt,),                                                   # batch tiles
            in_specs=[
                pl.BlockSpec((None, S * _BT, D_in), lambda i: (i, 0, 0)),  # x (all steps)
                pl.BlockSpec((D_in, 4 * Hp), lambda i: (0, 0)),            # W_ih^T
                pl.BlockSpec((Hp, 4 * Hp), lambda i: (0, 0)),              # W_hh^T
                pl.BlockSpec((1, 4 * Hp), lambda i: (0, 0)),               # b_ih + b_hh
                pl.BlockSpec((Hp, Dp), lambda i: (0, 0)),                  # W_out^T
                pl.BlockSpec((1, Dp), lambda i: (0, 0)),                   # b_out
            ],
            out_specs=pl.BlockSpec((None, S * _BT, Dp), lambda i: (i, 0, 0)),
            scratch_shapes=[
                pltpu.VMEM((S * _BT, Hp), jnp.float32),   # all hidden states (head LHS)
            ],
        ),
        compiler_params=pltpu.CompilerParams(
            dimension_semantics=("parallel",)),   # v7x: shard batch tiles across TCs
    )(x_tiled, wih_p, whh_p, b_p, wout_p, bout_p)

    # --- back to batch-first, drop batch / lane padding ---------------------------
    y = (y_tiled.reshape(nbt, S, _BT, Dp)
         .transpose(0, 2, 1, 3)
         .reshape(B_pad, S, Dp))
    return y[:B, :, :D_out]


def init_params(key, input_dim, output_dim, hidden_dim):
    """Deterministic init matching PyTorch nn.LSTM / nn.Linear shapes."""
    k1, k2, k3, k4, k5, k6, _ = jax.random.split(key, 7)
    bound_lstm = 1.0 / jnp.sqrt(hidden_dim)
    w_ih = jax.random.uniform(k1, (4 * hidden_dim, input_dim), jnp.float32,
                              -bound_lstm, bound_lstm)
    w_hh = jax.random.uniform(k2, (4 * hidden_dim, hidden_dim), jnp.float32,
                              -bound_lstm, bound_lstm)
    b_ih = jax.random.uniform(k3, (4 * hidden_dim,), jnp.float32,
                              -bound_lstm, bound_lstm)
    b_hh = jax.random.uniform(k4, (4 * hidden_dim,), jnp.float32,
                              -bound_lstm, bound_lstm)
    bound_lin = 1.0 / jnp.sqrt(hidden_dim)
    w_out = jax.random.uniform(k5, (output_dim, hidden_dim), jnp.float32,
                               -bound_lin, bound_lin)
    b_out = jax.random.uniform(k6, (output_dim,), jnp.float32,
                               -bound_lin, bound_lin)
    # Pre-transpose weights so the kernel does plain row-major matmuls.
    return (w_ih.T, w_hh.T, (b_ih + b_hh)[None, :], w_out.T, b_out[None, :])


def reference_forward(x_bsd, params):
    """Pure-JAX LSTM + Linear reference (matches PyTorch semantics)."""
    wih_t, whh_t, b, wout_t, bout = params
    B, S, D_in = x_bsd.shape
    H = whh_t.shape[0]

    def step(carry, x_t):
        h, c = carry
        gates = x_t @ wih_t + h @ whh_t + b
        i_g = jax.nn.sigmoid(gates[:, 0 * H:1 * H])
        f_g = jax.nn.sigmoid(gates[:, 1 * H:2 * H])
        g_g = jnp.tanh(gates[:, 2 * H:3 * H])
        o_g = jax.nn.sigmoid(gates[:, 3 * H:4 * H])
        c_new = f_g * c + i_g * g_g
        h_new = o_g * jnp.tanh(c_new)
        return (h_new, c_new), h_new @ wout_t + bout

    h0 = jnp.zeros((B, H), jnp.float32)
    c0 = jnp.zeros((B, H), jnp.float32)
    _, y_sbd = jax.lax.scan(step, (h0, c0), jnp.transpose(x_bsd, (1, 0, 2)))
    return jnp.transpose(y_sbd, (1, 0, 2))


if __name__ == "__main__":
    # Small shapes implied by the module: encoded_X is (batch, seq, input_dim).
    batch, seq, input_dim, hidden_dim, output_dim = 2, 8, 8, 32, 4

    key = jax.random.PRNGKey(0)
    k_x, k_p = jax.random.split(key)
    x = jax.random.normal(k_x, (batch, seq, input_dim), jnp.float32)
    params = init_params(k_p, input_dim, output_dim, hidden_dim)

    y = decoder_forward(x, params)
    y = jax.block_until_ready(y)

    y_ref = reference_forward(x, params)
    assert y.shape == (batch, seq, output_dim)
    assert jnp.allclose(y, y_ref, atol=1e-5, rtol=1e-5)

    print("KERNEL_OK")
</pallas_src>

<mosaic_0001>
module attributes {stable_mosaic.version = 11 : i64} {
  func.func @_decoder_kernel(%arg0: i32, %arg1: memref<1x64x8xf32, #tpu.memory_space<vmem>>, %arg2: memref<8x512xf32, #tpu.memory_space<vmem>>, %arg3: memref<128x512xf32, #tpu.memory_space<vmem>>, %arg4: memref<1x512xf32, #tpu.memory_space<vmem>>, %arg5: memref<128x128xf32, #tpu.memory_space<vmem>>, %arg6: memref<1x128xf32, #tpu.memory_space<vmem>>, %arg7: memref<1x64x128xf32, #tpu.memory_space<vmem>>, %arg8: memref<64x128xf32, #tpu.memory_space<vmem>>) attributes {dimension_semantics = [#tpu.dimension_semantics<parallel>], iteration_bounds = array<i64: 1>, scalar_prefetch = 0 : i64, scratch_operands = 1 : i64, tpu.core_type = #tpu.core_type<tc>, window_params = [{transform_indices = @transform_0, window_bounds = array<i64: 1, 64, 8>}, {pipeline_mode = #tpu.pipeline_mode<synchronous>, transform_indices = @transform_1, window_bounds = array<i64: 8, 512>}, {pipeline_mode = #tpu.pipeline_mode<synchronous>, transform_indices = @transform_2, window_bounds = array<i64: 128, 512>}, {pipeline_mode = #tpu.pipeline_mode<synchronous>, transform_indices = @transform_3, window_bounds = array<i64: 1, 512>}, {pipeline_mode = #tpu.pipeline_mode<synchronous>, transform_indices = @transform_4, window_bounds = array<i64: 128, 128>}, {pipeline_mode = #tpu.pipeline_mode<synchronous>, transform_indices = @transform_5, window_bounds = array<i64: 1, 128>}, {transform_indices = @transform_6, window_bounds = array<i64: 1, 64, 128>}]} {
    %c0 = arith.constant 0 : index
    %c0_0 = arith.constant 0 : index
    %c0_1 = arith.constant 0 : index
    %0 = vector.load %arg1[%c0, %c0_0, %c0_1] : memref<1x64x8xf32, #tpu.memory_space<vmem>>, vector<1x64x8xf32>
    %1 = vector.shape_cast %0 : vector<1x64x8xf32> to vector<64x8xf32>
    %c0_2 = arith.constant 0 : index
    %c0_3 = arith.constant 0 : index
    %2 = vector.load %arg2[%c0_2, %c0_3] : memref<8x512xf32, #tpu.memory_space<vmem>>, vector<8x512xf32>
    %cst = arith.constant dense<0.000000e+00> : vector<64x512xf32>
    %3 = tpu.matmul %1, %2, %cst {dimension_numbers = #tpu.dot_dimension_numbers<[1], [0], [0], [1], [0, 0, 1, 1], [], []>} : vector<64x8xf32>, vector<8x512xf32>, vector<64x512xf32> -> vector<64x512xf32>
    %c0_4 = arith.constant 0 : index
    %c0_5 = arith.constant 0 : index
    %4 = vector.load %arg4[%c0_4, %c0_5] : memref<1x512xf32, #tpu.memory_space<vmem>>, vector<1x512xf32>
    %5 = vector.broadcast %4 : vector<1x512xf32> to vector<64x512xf32>
    %6 = arith.addf %3, %5 : vector<64x512xf32>
    %cst_6 = arith.constant 0.000000e+00 : f32
    %7 = vector.broadcast %cst_6 : f32 to vector<8x128xf32>
    %cst_7 = arith.constant 0.000000e+00 : f32
    %8 = vector.broadcast %cst_7 : f32 to vector<8x128xf32>
    %9 = vector.extract_strided_slice %6 {offsets = [0, 0], sizes = [8, 512], strides = [1, 1]} : vector<64x512xf32> to vector<8x512xf32>
    %c0_8 = arith.constant 0 : index
    %c0_9 = arith.constant 0 : index
    %10 = vector.load %arg3[%c0_8, %c0_9] : memref<128x512xf32, #tpu.memory_space<vmem>>, vector<128x512xf32>
    %cst_10 = arith.constant dense<0.000000e+00> : vector<8x512xf32>
    %11 = tpu.matmul %7, %10, %cst_10 {dimension_numbers = #tpu.dot_dimension_numbers<[1], [0], [0], [1], [0, 0, 1, 1], [], []>} : vector<8x128xf32>, vector<128x512xf32>, vector<8x512xf32> -> vector<8x512xf32>
    %12 = arith.addf %9, %11 : vector<8x512xf32>
    %13 = vector.extract_strided_slice %12 {offsets = [0, 0], sizes = [8, 128], strides = [1, 1]} : vector<8x512xf32> to vector<8x128xf32>
    %14 = arith.negf %13 : vector<8x128xf32>
    %15 = math.exp %14 : vector<8x128xf32>
    %cst_11 = arith.constant 1.000000e+00 : f32
    %16 = vector.broadcast %cst_11 : f32 to vector<8x128xf32>
    %17 = arith.addf %16, %15 : vector<8x128xf32>
    %18 = arith.divf %16, %17 : vector<8x128xf32>
    %19 = vector.extract_strided_slice %12 {offsets = [0, 128], sizes = [8, 128], strides = [1, 1]} : vector<8x512xf32> to vector<8x128xf32>
    %20 = arith.negf %19 : vector<8x128xf32>
    %21 = math.exp %20 : vector<8x128xf32>
    %cst_12 = arith.constant 1.000000e+00 : f32
    %22 = vector.broadcast %cst_12 : f32 to vector<8x128xf32>
    %23 = arith.addf %22, %21 : vector<8x128xf32>
    %24 = arith.divf %22, %23 : vector<8x128xf32>
    %25 = vector.extract_strided_slice %12 {offsets = [0, 256], sizes = [8, 128], strides = [1, 1]} : vector<8x512xf32> to vector<8x128xf32>
    %26 = math.tanh %25 : vector<8x128xf32>
    %27 = vector.extract_strided_slice %12 {offsets = [0, 384], sizes = [8, 128], strides = [1, 1]} : vector<8x512xf32> to vector<8x128xf32>
    %28 = arith.negf %27 : vector<8x128xf32>
    %29 = math.exp %28 : vector<8x128xf32>
    %cst_13 = arith.constant 1.000000e+00 : f32
    %30 = vector.broadcast %cst_13 : f32 to vector<8x128xf32>
    %31 = arith.addf %30, %29 : vector<8x128xf32>
    %32 = arith.divf %30, %31 : vector<8x128xf32>
    %33 = arith.mulf %24, %8 : vector<8x128xf32>
    %34 = arith.mulf %18, %26 : vector<8x128xf32>
    %35 = arith.addf %33, %34 : vector<8x128xf32>
    %36 = math.tanh %35 : vector<8x128xf32>
    %37 = arith.mulf %32, %36 : vector<8x128xf32>
    %c0_14 = arith.constant 0 : index
    %c0_15 = arith.constant 0 : index
    %38 = vector.load %arg8[%c0_14, %c0_15] : memref<64x128xf32, #tpu.memory_space<vmem>>, vector<8x128xf32>
    tpu.vector_store %arg8[%c0_14, %c0_15], %37 {strides = array<i32>} : memref<64x128xf32, #tpu.memory_space<vmem>>, vector<8x128xf32>,
    %39 = vector.extract_strided_slice %6 {offsets = [8, 0], sizes = [8, 512], strides = [1, 1]} : vector<64x512xf32> to vector<8x512xf32>
    %c0_16 = arith.constant 0 : index
    %c0_17 = arith.constant 0 : index
    %40 = vector.load %arg3[%c0_16, %c0_17] : memref<128x512xf32, #tpu.memory_space<vmem>>, vector<128x512xf32>
    %cst_18 = arith.constant dense<0.000000e+00> : vector<8x512xf32>
    %41 = tpu.matmul %37, %40, %cst_18 {dimension_numbers = #tpu.dot_dimension_numbers<[1], [0], [0], [1], [0, 0, 1, 1], [], []>} : vector<8x128xf32>, vector<128x512xf32>, vector<8x512xf32> -> vector<8x512xf32>
    %42 = arith.addf %39, %41 : vector<8x512xf32>
    %43 = vector.extract_strided_slice %42 {offsets = [0, 0], sizes = [8, 128], strides = [1, 1]} : vector<8x512xf32> to vector<8x128xf32>
    %44 = arith.negf %43 : vector<8x128xf32>
    %45 = math.exp %44 : vector<8x128xf32>
    %cst_19 = arith.constant 1.000000e+00 : f32
    %46 = vector.broadcast %cst_19 : f32 to vector<8x128xf32>
    %47 = arith.addf %46, %45 : vector<8x128xf32>
    %48 = arith.divf %46, %47 : vector<8x128xf32>
    %49 = vector.extract_strided_slice %42 {offsets = [0, 128], sizes = [8, 128], strides = [1, 1]} : vector<8x512xf32> to vector<8x128xf32>
    %50 = arith.negf %49 : vector<8x128xf32>
    %51 = math.exp %50 : vector<8x128xf32>
    %cst_20 = arith.constant 1.000000e+00 : f32
    %52 = vector.broadcast %cst_20 : f32 to vector<8x128xf32>
    %53 = arith.addf %52, %51 : vector<8x128xf32>
    %54 = arith.divf %52, %53 : vector<8x128xf32>
    %55 = vector.extract_strided_slice %42 {offsets = [0, 256], sizes = [8, 128], strides = [1, 1]} : vector<8x512xf32> to vector<8x128xf32>
    %56 = math.tanh %55 : vector<8x128xf32>
    %57 = vector.extract_strided_slice %42 {offsets = [0, 384], sizes = [8, 128], strides = [1, 1]} : vector<8x512xf32> to vector<8x128xf32>
    %58 = arith.negf %57 : vector<8x128xf32>
    %59 = math.exp %58 : vector<8x128xf32>
    %cst_21 = arith.constant 1.000000e+00 : f32
    %60 = vector.broadcast %cst_21 : f32 to vector<8x128xf32>
    %61 = arith.addf %60, %59 : vector<8x128xf32>
    %62 = arith.divf %60, %61 : vector<8x128xf32>
    %63 = arith.mulf %54, %35 : vector<8x128xf32>
    %64 = arith.mulf %48, %56 : vector<8x128xf32>
    %65 = arith.addf %63, %64 : vector<8x128xf32>
    %66 = math.tanh %65 : vector<8x128xf32>
    %67 = arith.mulf %62, %66 : vector<8x128xf32>
    %c8 = arith.constant 8 : index
    %c0_22 = arith.constant 0 : index
    %68 = vector.load %arg8[%c8, %c0_22] : memref<64x128xf32, #tpu.memory_space<vmem>>, vector<8x128xf32>
    tpu.vector_store %arg8[%c8, %c0_22], %67 {strides = array<i32>} : memref<64x128xf32, #tpu.memory_space<vmem>>, vector<8x128xf32>,
    %69 = vector.extract_strided_slice %6 {offsets = [16, 0], sizes = [8, 512], strides = [1, 1]} : vector<64x512xf32> to vector<8x512xf32>
    %c0_23 = arith.constant 0 : index
    %c0_24 = arith.constant 0 : index
    %70 = vector.load %arg3[%c0_23, %c0_24] : memref<128x512xf32, #tpu.memory_space<vmem>>, vector<128x512xf32>
    %cst_25 = arith.constant dense<0.000000e+00> : vector<8x512xf32>
    %71 = tpu.matmul %67, %70, %cst_25 {dimension_numbers = #tpu.dot_dimension_numbers<[1], [0], [0], [1], [0, 0, 1, 1], [], []>} : vector<8x128xf32>, vector<128x512xf32>, vector<8x512xf32> -> vector<8x512xf32>
    %72 = arith.addf %69, %71 : vector<8x512xf32>
    %73 = vector.extract_strided_slice %72 {offsets = [0, 0], sizes = [8, 128], strides = [1, 1]} : vector<8x512xf32> to vector<8x128xf32>
    %74 = arith.negf %73 : vector<8x128xf32>
    %75 = math.exp %74 : vector<8x128xf32>
    %cst_26 = arith.constant 1.000000e+00 : f32
    %76 = vector.broadcast %cst_26 : f32 to vector<8x128xf32>
    %77 = arith.addf %76, %75 : vector<8x128xf32>
    %78 = arith.divf %76, %77 : vector<8x128xf32>
    %79 = vector.extract_strided_slice %72 {offsets = [0, 128], sizes = [8, 128], strides = [1, 1]} : vector<8x512xf32> to vector<8x128xf32>
    %80 = arith.negf %79 : vector<8x128xf32>
    %81 = math.exp %80 : vector<8x128xf32>
    %cst_27 = arith.constant 1.000000e+00 : f32
    %82 = vector.broadcast %cst_27 : f32 to vector<8x128xf32>
    %83 = arith.addf %82, %81 : vector<8x128xf32>
    %84 = arith.divf %82, %83 : vector<8x128xf32>
    %85 = vector.extract_strided_slice %72 {offsets = [0, 256], sizes = [8, 128], strides = [1, 1]} : vector<8x512xf32> to vector<8x128xf32>
    %86 = math.tanh %85 : vector<8x128xf32>
    %87 = vector.extract_strided_slice %72 {offsets = [0, 384], sizes = [8, 128], strides = [1, 1]} : vector<8x512xf32> to vector<8x128xf32>
    %88 = arith.negf %87 : vector<8x128xf32>
    %89 = math.exp %88 : vector<8x128xf32>
    %cst_28 = arith.constant 1.000000e+00 : f32
    %90 = vector.broadcast %cst_28 : f32 to vector<8x128xf32>
    %91 = arith.addf %90, %89 : vector<8x128xf32>
    %92 = arith.divf %90, %91 : vector<8x128xf32>
    %93 = arith.mulf %84, %65 : vector<8x128xf32>
    %94 = arith.mulf %78, %86 : vector<8x128xf32>
    %95 = arith.addf %93, %94 : vector<8x128xf32>
    %96 = math.tanh %95 : vector<8x128xf32>
    %97 = arith.mulf %92, %96 : vector<8x128xf32>
    %c16 = arith.constant 16 : index
    %c0_29 = arith.constant 0 : index
    %98 = vector.load %arg8[%c16, %c0_29] : memref<64x128xf32, #tpu.memory_space<vmem>>, vector<8x128xf32>
    tpu.vector_store %arg8[%c16, %c0_29], %97 {strides = array<i32>} : memref<64x128xf32, #tpu.memory_space<vmem>>, vector<8x128xf32>,
    %99 = vector.extract_strided_slice %6 {offsets = [24, 0], sizes = [8, 512], strides = [1, 1]} : vector<64x512xf32> to vector<8x512xf32>
    %c0_30 = arith.constant 0 : index
    %c0_31 = arith.constant 0 : index
    %100 = vector.load %arg3[%c0_30, %c0_31] : memref<128x512xf32, #tpu.memory_space<vmem>>, vector<128x512xf32>
    %cst_32 = arith.constant dense<0.000000e+00> : vector<8x512xf32>
    %101 = tpu.matmul %97, %100, %cst_32 {dimension_numbers = #tpu.dot_dimension_numbers<[1], [0], [0], [1], [0, 0, 1, 1], [], []>} : vector<8x128xf32>, vector<128x512xf32>, vector<8x512xf32> -> vector<8x512xf32>
    %102 = arith.addf %99, %101 : vector<8x512xf32>
    %103 = vector.extract_strided_slice %102 {offsets = [0, 0], sizes = [8, 128], strides = [1, 1]} : vector<8x512xf32> to vector<8x128xf32>
    %104 = arith.negf %103 : vector<8x128xf32>
    %105 = math.exp %104 : vector<8x128xf32>
    %cst_33 = arith.constant 1.000000e+00 : f32
    %106 = vector.broadcast %cst_33 : f32 to vector<8x128xf32>
    %107 = arith.addf %106, %105 : vector<8x128xf32>
    %108 = arith.divf %106, %107 : vector<8x128xf32>
    %109 = vector.extract_strided_slice %102 {offsets = [0, 128], sizes = [8, 128], strides = [1, 1]} : vector<8x512xf32> to vector<8x128xf32>
    %110 = arith.negf %109 : vector<8x128xf32>
    %111 = math.exp %110 : vector<8x128xf32>
    %cst_34 = arith.constant 1.000000e+00 : f32
    %112 = vector.broadcast %cst_34 : f32 to vector<8x128xf32>
    %113 = arith.addf %112, %111 : vector<8x128xf32>
    %114 = arith.divf %112, %113 : vector<8x128xf32>
    %115 = vector.extract_strided_slice %102 {offsets = [0, 256], sizes = [8, 128], strides = [1, 1]} : vector<8x512xf32> to vector<8x128xf32>
    %116 = math.tanh %115 : vector<8x128xf32>
    %117 = vector.extract_strided_slice %102 {offsets = [0, 384], sizes = [8, 128], strides = [1, 1]} : vector<8x512xf32> to vector<8x128xf32>
    %118 = arith.negf %117 : vector<8x128xf32>
    %119 = math.exp %118 : vector<8x128xf32>
    %cst_35 = arith.constant 1.000000e+00 : f32
    %120 = vector.broadcast %cst_35 : f32 to vector<8x128xf32>
    %121 = arith.addf %120, %119 : vector<8x128xf32>
    %122 = arith.divf %120, %121 : vector<8x128xf32>
    %123 = arith.mulf %114, %95 : vector<8x128xf32>
    %124 = arith.mulf %108, %116 : vector<8x128xf32>
    %125 = arith.addf %123, %124 : vector<8x128xf32>
    %126 = math.tanh %125 : vector<8x128xf32>
    %127 = arith.mulf %122, %126 : vector<8x128xf32>
    %c24 = arith.constant 24 : index
    %c0_36 = arith.constant 0 : index
    %128 = vector.load %arg8[%c24, %c0_36] : memref<64x128xf32, #tpu.memory_space<vmem>>, vector<8x128xf32>
    tpu.vector_store %arg8[%c24, %c0_36], %127 {strides = array<i32>} : memref<64x128xf32, #tpu.memory_space<vmem>>, vector<8x128xf32>,
    %129 = vector.extract_strided_slice %6 {offsets = [32, 0], sizes = [8, 512], strides = [1, 1]} : vector<64x512xf32> to vector<8x512xf32>
    %c0_37 = arith.constant 0 : index
    %c0_38 = arith.constant 0 : index
    %130 = vector.load %arg3[%c0_37, %c0_38] : memref<128x512xf32, #tpu.memory_space<vmem>>, vector<128x512xf32>
    %cst_39 = arith.constant dense<0.000000e+00> : vector<8x512xf32>
    %131 = tpu.matmul %127, %130, %cst_39 {dimension_numbers = #tpu.dot_dimension_numbers<[1], [0], [0], [1], [0, 0, 1, 1], [], []>} : vector<8x128xf32>, vector<128x512xf32>, vector<8x512xf32> -> vector<8x512xf32>
    %132 = arith.addf %129, %131 : vector<8x512xf32>
    %133 = vector.extract_strided_slice %132 {offsets = [0, 0], sizes = [8, 128], strides = [1, 1]} : vector<8x512xf32> to vector<8x128xf32>
    %134 = arith.negf %133 : vector<8x128xf32>
    %135 = math.exp %134 : vector<8x128xf32>
    %cst_40 = arith.constant 1.000000e+00 : f32
    %136 = vector.broadcast %cst_40 : f32 to vector<8x128xf32>
    %137 = arith.addf %136, %135 : vector<8x128xf32>
    %138 = arith.divf %136, %137 : vector<8x128xf32>
    %139 = vector.extract_strided_slice %132 {offsets = [0, 128], sizes = [8, 128], strides = [1, 1]} : vector<8x512xf32> to vector<8x128xf32>
    %140 = arith.negf %139 : vector<8x128xf32>
    %141 = math.exp %140 : vector<8x128xf32>
    %cst_41 = arith.constant 1.000000e+00 : f32
    %142 = vector.broadcast %cst_41 : f32 to vector<8x128xf32>
    %143 = arith.addf %142, %141 : vector<8x128xf32>
    %144 = arith.divf %142, %143 : vector<8x128xf32>
    %145 = vector.extract_strided_slice %132 {offsets = [0, 256], sizes = [8, 128], strides = [1, 1]} : vector<8x512xf32> to vector<8x128xf32>
    %146 = math.tanh %145 : vector<8x128xf32>
    %147 = vector.extract_strided_slice %132 {offsets = [0, 384], sizes = [8, 128], strides = [1, 1]} : vector<8x512xf32> to vector<8x128xf32>
    %148 = arith.negf %147 : vector<8x128xf32>
    %149 = math.exp %148 : vector<8x128xf32>
    %cst_42 = arith.constant 1.000000e+00 : f32
    %150 = vector.broadcast %cst_42 : f32 to vector<8x128xf32>
    %151 = arith.addf %150, %149 : vector<8x128xf32>
    %152 = arith.divf %150, %151 : vector<8x128xf32>
    %153 = arith.mulf %144, %125 : vector<8x128xf32>
    %154 = arith.mulf %138, %146 : vector<8x128xf32>
    %155 = arith.addf %153, %154 : vector<8x128xf32>
    %156 = math.tanh %155 : vector<8x128xf32>
    %157 = arith.mulf %152, %156 : vector<8x128xf32>
    %c32 = arith.constant 32 : index
    %c0_43 = arith.constant 0 : index
    %158 = vector.load %arg8[%c32, %c0_43] : memref<64x128xf32, #tpu.memory_space<vmem>>, vector<8x128xf32>
    tpu.vector_store %arg8[%c32, %c0_43], %157 {strides = array<i32>} : memref<64x128xf32, #tpu.memory_space<vmem>>, vector<8x128xf32>,
    %159 = vector.extract_strided_slice %6 {offsets = [40, 0], sizes = [8, 512], strides = [1, 1]} : vector<64x512xf32> to vector<8x512xf32>
    %c0_44 = arith.constant 0 : index
    %c0_45 = arith.constant 0 : index
    %160 = vector.load %arg3[%c0_44, %c0_45] : memref<128x512xf32, #tpu.memory_space<vmem>>, vector<128x512xf32>
    %cst_46 = arith.constant dense<0.000000e+00> : vector<8x512xf32>
    %161 = tpu.matmul %157, %160, %cst_46 {dimension_numbers = #tpu.dot_dimension_numbers<[1], [0], [0], [1], [0, 0, 1, 1], [], []>} : vector<8x128xf32>, vector<128x512xf32>, vector<8x512xf32> -> vector<8x512xf32>
    %162 = arith.addf %159, %161 : vector<8x512xf32>
    %163 = vector.extract_strided_slice %162 {offsets = [0, 0], sizes = [8, 128], strides = [1, 1]} : vector<8x512xf32> to vector<8x128xf32>
    %164 = arith.negf %163 : vector<8x128xf32>
    %165 = math.exp %164 : vector<8x128xf32>
    %cst_47 = arith.constant 1.000000e+00 : f32
    %166 = vector.broadcast %cst_47 : f32 to vector<8x128xf32>
    %167 = arith.addf %166, %165 : vector<8x128xf32>
    %168 = arith.divf %166, %167 : vector<8x128xf32>
    %169 = vector.extract_strided_slice %162 {offsets = [0, 128], sizes = [8, 128], strides = [1, 1]} : vector<8x512xf32> to vector<8x128xf32>
    %170 = arith.negf %169 : vector<8x128xf32>
    %171 = math.exp %170 : vector<8x128xf32>
    %cst_48 = arith.constant 1.000000e+00 : f32
    %172 = vector.broadcast %cst_48 : f32 to vector<8x128xf32>
    %173 = arith.addf %172, %171 : vector<8x128xf32>
    %174 = arith.divf %172, %173 : vector<8x128xf32>
    %175 = vector.extract_strided_slice %162 {offsets = [0, 256], sizes = [8, 128], strides = [1, 1]} : vector<8x512xf32> to vector<8x128xf32>
    %176 = math.tanh %175 : vector<8x128xf32>
    %177 = vector.extract_strided_slice %162 {offsets = [0, 384], sizes = [8, 128], strides = [1, 1]} : vector<8x512xf32> to vector<8x128xf32>
    %178 = arith.negf %177 : vector<8x128xf32>
    %179 = math.exp %178 : vector<8x128xf32>
    %cst_49 = arith.constant 1.000000e+00 : f32
    %180 = vector.broadcast %cst_49 : f32 to vector<8x128xf32>
    %181 = arith.addf %180, %179 : vector<8x128xf32>
    %182 = arith.divf %180, %181 : vector<8x128xf32>
    %183 = arith.mulf %174, %155 : vector<8x128xf32>
    %184 = arith.mulf %168, %176 : vector<8x128xf32>
    %185 = arith.addf %183, %184 : vector<8x128xf32>
    %186 = math.tanh %185 : vector<8x128xf32>
    %187 = arith.mulf %182, %186 : vector<8x128xf32>
    %c40 = arith.constant 40 : index
    %c0_50 = arith.constant 0 : index
    %188 = vector.load %arg8[%c40, %c0_50] : memref<64x128xf32, #tpu.memory_space<vmem>>, vector<8x128xf32>
    tpu.vector_store %arg8[%c40, %c0_50], %187 {strides = array<i32>} : memref<64x128xf32, #tpu.memory_space<vmem>>, vector<8x128xf32>,
    %189 = vector.extract_strided_slice %6 {offsets = [48, 0], sizes = [8, 512], strides = [1, 1]} : vector<64x512xf32> to vector<8x512xf32>
    %c0_51 = arith.constant 0 : index
    %c0_52 = arith.constant 0 : index
    %190 = vector.load %arg3[%c0_51, %c0_52] : memref<128x512xf32, #tpu.memory_space<vmem>>, vector<128x512xf32>
    %cst_53 = arith.constant dense<0.000000e+00> : vector<8x512xf32>
    %191 = tpu.matmul %187, %190, %cst_53 {dimension_numbers = #tpu.dot_dimension_numbers<[1], [0], [0], [1], [0, 0, 1, 1], [], []>} : vector<8x128xf32>, vector<128x512xf32>, vector<8x512xf32> -> vector<8x512xf32>
    %192 = arith.addf %189, %191 : vector<8x512xf32>
    %193 = vector.extract_strided_slice %192 {offsets = [0, 0], sizes = [8, 128], strides = [1, 1]} : vector<8x512xf32> to vector<8x128xf32>
    %194 = arith.negf %193 : vector<8x128xf32>
    %195 = math.exp %194 : vector<8x128xf32>
    %cst_54 = arith.constant 1.000000e+00 : f32
    %196 = vector.broadcast %cst_54 : f32 to vector<8x128xf32>
    %197 = arith.addf %196, %195 : vector<8x128xf32>
    %198 = arith.divf %196, %197 : vector<8x128xf32>
    %199 = vector.extract_strided_slice %192 {offsets = [0, 128], sizes = [8, 128], strides = [1, 1]} : vector<8x512xf32> to vector<8x128xf32>
    %200 = arith.negf %199 : vector<8x128xf32>
    %201 = math.exp %200 : vector<8x128xf32>
    %cst_55 = arith.constant 1.000000e+00 : f32
    %202 = vector.broadcast %cst_55 : f32 to vector<8x128xf32>
    %203 = arith.addf %202, %201 : vector<8x128xf32>
    %204 = arith.divf %202, %203 : vector<8x128xf32>
    %205 = vector.extract_strided_slice %192 {offsets = [0, 256], sizes = [8, 128], strides = [1, 1]} : vector<8x512xf32> to vector<8x128xf32>
    %206 = math.tanh %205 : vector<8x128xf32>
    %207 = vector.extract_strided_slice %192 {offsets = [0, 384], sizes = [8, 128], strides = [1, 1]} : vector<8x512xf32> to vector<8x128xf32>
    %208 = arith.negf %207 : vector<8x128xf32>
    %209 = math.exp %208 : vector<8x128xf32>
    %cst_56 = arith.constant 1.000000e+00 : f32
    %210 = vector.broadcast %cst_56 : f32 to vector<8x128xf32>
    %211 = arith.addf %210, %209 : vector<8x128xf32>
    %212 = arith.divf %210, %211 : vector<8x128xf32>
    %213 = arith.mulf %204, %185 : vector<8x128xf32>
    %214 = arith.mulf %198, %206 : vector<8x128xf32>
    %215 = arith.addf %213, %214 : vector<8x128xf32>
    %216 = math.tanh %215 : vector<8x128xf32>
    %217 = arith.mulf %212, %216 : vector<8x128xf32>
    %c48 = arith.constant 48 : index
    %c0_57 = arith.constant 0 : index
    %218 = vector.load %arg8[%c48, %c0_57] : memref<64x128xf32, #tpu.memory_space<vmem>>, vector<8x128xf32>
    tpu.vector_store %arg8[%c48, %c0_57], %217 {strides = array<i32>} : memref<64x128xf32, #tpu.memory_space<vmem>>, vector<8x128xf32>,
    %219 = vector.extract_strided_slice %6 {offsets = [56, 0], sizes = [8, 512], strides = [1, 1]} : vector<64x512xf32> to vector<8x512xf32>
    %c0_58 = arith.constant 0 : index
    %c0_59 = arith.constant 0 : index
    %220 = vector.load %arg3[%c0_58, %c0_59] : memref<128x512xf32, #tpu.memory_space<vmem>>, vector<128x512xf32>
    %cst_60 = arith.constant dense<0.000000e+00> : vector<8x512xf32>
    %221 = tpu.matmul %217, %220, %cst_60 {dimension_numbers = #tpu.dot_dimension_numbers<[1], [0], [0], [1], [0, 0, 1, 1], [], []>} : vector<8x128xf32>, vector<128x512xf32>, vector<8x512xf32> -> vector<8x512xf32>
    %222 = arith.addf %219, %221 : vector<8x512xf32>
    %223 = vector.extract_strided_slice %222 {offsets = [0, 0], sizes = [8, 128], strides = [1, 1]} : vector<8x512xf32> to vector<8x128xf32>
    %224 = arith.negf %223 : vector<8x128xf32>
    %225 = math.exp %224 : vector<8x128xf32>
    %cst_61 = arith.constant 1.000000e+00 : f32
    %226 = vector.broadcast %cst_61 : f32 to vector<8x128xf32>
    %227 = arith.addf %226, %225 : vector<8x128xf32>
    %228 = arith.divf %226, %227 : vector<8x128xf32>
    %229 = vector.extract_strided_slice %222 {offsets = [0, 128], sizes = [8, 128], strides = [1, 1]} : vector<8x512xf32> to vector<8x128xf32>
    %230 = arith.negf %229 : vector<8x128xf32>
    %231 = math.exp %230 : vector<8x128xf32>
    %cst_62 = arith.constant 1.000000e+00 : f32
    %232 = vector.broadcast %cst_62 : f32 to vector<8x128xf32>
    %233 = arith.addf %232, %231 : vector<8x128xf32>
    %234 = arith.divf %232, %233 : vector<8x128xf32>
    %235 = vector.extract_strided_slice %222 {offsets = [0, 256], sizes = [8, 128], strides = [1, 1]} : vector<8x512xf32> to vector<8x128xf32>
    %236 = math.tanh %235 : vector<8x128xf32>
    %237 = vector.extract_strided_slice %222 {offsets = [0, 384], sizes = [8, 128], strides = [1, 1]} : vector<8x512xf32> to vector<8x128xf32>
    %238 = arith.negf %237 : vector<8x128xf32>
    %239 = math.exp %238 : vector<8x128xf32>
    %cst_63 = arith.constant 1.000000e+00 : f32
    %240 = vector.broadcast %cst_63 : f32 to vector<8x128xf32>
    %241 = arith.addf %240, %239 : vector<8x128xf32>
    %242 = arith.divf %240, %241 : vector<8x128xf32>
    %243 = arith.mulf %234, %215 : vector<8x128xf32>
    %244 = arith.mulf %228, %236 : vector<8x128xf32>
    %245 = arith.addf %243, %244 : vector<8x128xf32>
    %246 = math.tanh %245 : vector<8x128xf32>
    %247 = arith.mulf %242, %246 : vector<8x128xf32>
    %c56 = arith.constant 56 : index
    %c0_64 = arith.constant 0 : index
    %248 = vector.load %arg8[%c56, %c0_64] : memref<64x128xf32, #tpu.memory_space<vmem>>, vector<8x128xf32>
    tpu.vector_store %arg8[%c56, %c0_64], %247 {strides = array<i32>} : memref<64x128xf32, #tpu.memory_space<vmem>>, vector<8x128xf32>,
    %c0_65 = arith.constant 0 : index
    %c0_66 = arith.constant 0 : index
    %249 = vector.load %arg8[%c0_65, %c0_66] : memref<64x128xf32, #tpu.memory_space<vmem>>, vector<64x128xf32>
    %c0_67 = arith.constant 0 : index
    %c0_68 = arith.constant 0 : index
    %250 = vector.load %arg5[%c0_67, %c0_68] : memref<128x128xf32, #tpu.memory_space<vmem>>, vector<128x128xf32>
    %cst_69 = arith.constant dense<0.000000e+00> : vector<64x128xf32>
    %251 = tpu.matmul %249, %250, %cst_69 {dimension_numbers = #tpu.dot_dimension_numbers<[1], [0], [0], [1], [0, 0, 1, 1], [], []>} : vector<64x128xf32>, vector<128x128xf32>, vector<64x128xf32> -> vector<64x128xf32>
    %c0_70 = arith.constant 0 : index
    %c0_71 = arith.constant 0 : index
    %252 = vector.load %arg6[%c0_70, %c0_71] : memref<1x128xf32, #tpu.memory_space<vmem>>, vector<1x128xf32>
    %253 = vector.broadcast %252 : vector<1x128xf32> to vector<64x128xf32>
    %254 = arith.addf %251, %253 : vector<64x128xf32>
    %c0_72 = arith.constant 0 : index
    %c0_73 = arith.constant 0 : index
    %c0_74 = arith.constant 0 : index
    %255 = vector.load %arg7[%c0_72, %c0_73, %c0_74] : memref<1x64x128xf32, #tpu.memory_space<vmem>>, vector<1x64x128xf32>
    %256 = vector.shape_cast %255 : vector<1x64x128xf32> to vector<64x128xf32>
    %257 = vector.shape_cast %254 : vector<64x128xf32> to vector<1x64x128xf32>
    tpu.vector_store %arg7[%c0_72, %c0_73, %c0_74], %257 {strides = array<i32>} : memref<1x64x128xf32, #tpu.memory_space<vmem>>, vector<1x64x128xf32>,
    return
  }
  func.func @transform_0(%arg0: i32) -> (i32, i32, i32) {
    %c0_i32 = arith.constant 0 : i32
    %c0_i32_0 = arith.constant 0 : i32
    %c0_i32_1 = arith.constant 0 : i32
    return %arg0, %c0_i32, %c0_i32_0 : i32, i32, i32
  }
  func.func @transform_1(%arg0: i32) -> (i32, i32) {
    %c0_i32 = arith.constant 0 : i32
    %c0_i32_0 = arith.constant 0 : i32
    %c0_i32_1 = arith.constant 0 : i32
    return %c0_i32, %c0_i32_0 : i32, i32
  }
  func.func @transform_2(%arg0: i32) -> (i32, i32) {
    %c0_i32 = arith.constant 0 : i32
    %c0_i32_0 = arith.constant 0 : i32
    %c0_i32_1 = arith.constant 0 : i32
    return %c0_i32, %c0_i32_0 : i32, i32
  }
  func.func @transform_3(%arg0: i32) -> (i32, i32) {
    %c0_i32 = arith.constant 0 : i32
    %c0_i32_0 = arith.constant 0 : i32
    %c0_i32_1 = arith.constant 0 : i32
    return %c0_i32, %c0_i32_0 : i32, i32
  }
  func.func @transform_4(%arg0: i32) -> (i32, i32) {
    %c0_i32 = arith.constant 0 : i32
    %c0_i32_0 = arith.constant 0 : i32
    %c0_i32_1 = arith.constant 0 : i32
    return %c0_i32, %c0_i32_0 : i32, i32
  }
  func.func @transform_5(%arg0: i32) -> (i32, i32) {
    %c0_i32 = arith.constant 0 : i32
    %c0_i32_0 = arith.constant 0 : i32
    %c0_i32_1 = arith.constant 0 : i32
    return %c0_i32, %c0_i32_0 : i32, i32
  }
  func.func @transform_6(%arg0: i32) -> (i32, i32, i32) {
    %c0_i32 = arith.constant 0 : i32
    %c0_i32_0 = arith.constant 0 : i32
    %c0_i32_1 = arith.constant 0 : i32
    return %arg0, %c0_i32, %c0_i32_0 : i32, i32, i32
  }
}

</mosaic_0001>

<llo_original>
// kernel: tpu_custom_call.1
$region0: #{tpu_custom_call.1}
  #allocation0 [shape = 'u32[]', space=smem, size = 0x4, offset = 0x4, fixed_abs, tag = 'smem constant byte address 0x4 - core index']
  #allocation1 [shape = 'u32[144,128]{1,0:T(1,128)}', space=vmem, size = 0x12000, scoped, tag = 'internal scratch']
  #allocation2 [shape = 'f32[64,128]{1,0:T(8,128)}', space=vmem, size = 0x8000, scoped, tag = 'scratch operand']
  %s0 = inlined_call_operand.vmem [shape: f32[1,64,8], index: 0, kind: input, shape index: {}]
  %s1 = inlined_call_operand.vmem [shape: f32[8,512], index: 1, kind: input, shape index: {}]
  %s2 = inlined_call_operand.hbm [shape: f32[128,512], index: 2, kind: input, shape index: {}]
  %s3 = inlined_call_operand.vmem [shape: f32[1,512], index: 3, kind: input, shape index: {}]
  %s4 = inlined_call_operand.hbm [shape: f32[128,128], index: 4, kind: input, shape index: {}]
  %s5 = inlined_call_operand.vmem [shape: f32[1,128], index: 5, kind: input, shape index: {}]
  %s6 = inlined_call_operand.hbm [shape: f32[1,64,128], index: 6, kind: output, shape index: {}]
  %s7 = sld [smem:[#allocation0]]
  $region42: #{tpu_custom_call.1} parent=0
    _
  %s9 = ssub.s32 1, %s7
  %s10 = scalar_select 0, %s9, %s7
  $region1: #{tpu_custom_call.1} parent=0
    #allocation3 [shape = 'u8[262144]{0}', space=vmem, size = 0x40000, scoped, tag = 'input window, operand 2, single buffered']
    #allocation4 [shape = 's32[1]{0}', space=sflag, size = 0x4, scoped, tag = 'scoped memory for tpu_custom_call.1']
    #allocation5 [shape = 's32[1]{0}', space=sflag, size = 0x4, scoped, tag = 'scoped memory for tpu_custom_call.1']
    #allocation6 [shape = 'u8[65536]{0}', space=vmem, size = 0x10000, scoped, tag = 'input window, operand 4, single buffered']
    #allocation7 [shape = 's32[1]{0}', space=sflag, size = 0x4, scoped, tag = 'scoped memory for tpu_custom_call.1']
    #allocation8 [shape = 'u8[32768]{0}', space=vmem, size = 0x8000, scoped, tag = 'output window, operand 0, single buffered']
    %11 = vsyncpa [#allocation4], 0
    %12 = vsyncpa [#allocation7], 0
    %13 = vsyncpa [#allocation5], 0
    // Predicated region
    $region2: #{tpu_custom_call.1} parent=1 // pred_check
      _
    $region3: #{tpu_custom_call.1} parent=1 // pred_check_branch
      %15 = sbr.rel (0) target = $region5
    $region4: #{tpu_custom_call.1} parent=1 // pred_region
      _
    $region5: #{tpu_custom_call.1} parent=1 // pred_fallthru
      _
    // Predicated region
    $region6: #{tpu_custom_call.1} parent=1 // pred_check
      _
    $region7: #{tpu_custom_call.1} parent=1 // pred_check_branch
      %17 = sbr.rel (0) target = $region9
    $region8: #{tpu_custom_call.1} parent=1 // pred_region
      _
    $region9: #{tpu_custom_call.1} parent=1 // pred_fallthru
      _
    // Predicated region
    $region10: #{tpu_custom_call.1} parent=1 // pred_check
      _
    $region11: #{tpu_custom_call.1} parent=1 // pred_check_branch
      %19 = sbr.rel (0) target = $region13
    $region12: #{tpu_custom_call.1} parent=1 // pred_region
      %s21 = ssub.s32 8192, 8192
      %22 = vsyncadd [#allocation4], %s21
      %s23 = sshll.u32 [#allocation3], 4
      %s24 = int_to_ptr.vmem [resolvable:$true] %s23
      %29 = dma.hbm_to_vmem [thread:$0]  %s2, 8192, %s24, [#allocation4], 512, 512, 32
    $region13: #{tpu_custom_call.1} parent=1 // pred_fallthru
      _
    // Predicated region
    $region14: #{tpu_custom_call.1} parent=1 // pred_check
      _
    $region15: #{tpu_custom_call.1} parent=1 // pred_check_branch
      %31 = sbr.rel (0) target = $region17
    $region16: #{tpu_custom_call.1} parent=1 // pred_region
      _
    $region17: #{tpu_custom_call.1} parent=1 // pred_fallthru
      _
    // Predicated region
    $region18: #{tpu_custom_call.1} parent=1 // pred_check
      _
    $region19: #{tpu_custom_call.1} parent=1 // pred_check_branch
      %33 = sbr.rel (0) target = $region21
    $region20: #{tpu_custom_call.1} parent=1 // pred_region
      %s35 = ssub.s32 2048, 2048
      %36 = vsyncadd [#allocation7], %s35
      %s37 = sshll.u32 [#allocation6], 4
      %s38 = int_to_ptr.vmem [resolvable:$true] %s37
      %43 = dma.hbm_to_vmem [thread:$0]  %s4, 2048, %s38, [#allocation7], 128, 128, 8
    $region21: #{tpu_custom_call.1} parent=1 // pred_fallthru
      _
    // Predicated region
    $region22: #{tpu_custom_call.1} parent=1 // pred_check
      _
    $region23: #{tpu_custom_call.1} parent=1 // pred_check_branch
      %45 = sbr.rel (0) target = $region25
    $region24: #{tpu_custom_call.1} parent=1 // pred_region
      _
    $region25: #{tpu_custom_call.1} parent=1 // pred_fallthru
      _
    // Predicated region
    $region26: #{tpu_custom_call.1} parent=1 // pred_check
      _
    $region27: #{tpu_custom_call.1} parent=1 // pred_check_branch
      %47 = sbr.rel (0) target = $region29
    $region28: #{tpu_custom_call.1} parent=1 // pred_region
      %48 = dma.done [#allocation4], 8192
    $region29: #{tpu_custom_call.1} parent=1 // pred_fallthru
      _
    // Predicated region
    $region30: #{tpu_custom_call.1} parent=1 // pred_check
      _
    $region31: #{tpu_custom_call.1} parent=1 // pred_check_branch
      %50 = sbr.rel (0) target = $region33
    $region32: #{tpu_custom_call.1} parent=1 // pred_region
      %51 = dma.done [#allocation7], 2048
    $region33: #{tpu_custom_call.1} parent=1 // pred_fallthru
      _
    %v52 = vld [vmem:[%s0] sm:$0xff]
    %v53 = vld [vmem:[%s0 + $0x8] sm:$0xff]
    %v54 = vld [vmem:[%s0 + $0x10] sm:$0xff]
    %v55 = vld [vmem:[%s0 + $0x18] sm:$0xff]
    %v56 = vld [vmem:[%s0 + $0x20] sm:$0xff]
    %v57 = vld [vmem:[%s0 + $0x28] sm:$0xff]
    %v58 = vld [vmem:[%s0 + $0x30] sm:$0xff]
    %v59 = vld [vmem:[%s0 + $0x38] sm:$0xff]
    %v60 = vld [vmem:[%s1] sm:$0xff]
    %v61 = vld [vmem:[%s1 + $0x8] sm:$0xff]
    %v62 = vld [vmem:[%s1 + $0x10] sm:$0xff]
    %v63 = vld [vmem:[%s1 + $0x18] sm:$0xff]
    %v64 = vld [vmem:[%s3] sm:$0xf]
    %v66 = vlaneseq
    %v67 = vshrl.u32 %v66, 7
    %v68 = vsub.s32 0, %v67
    %v69 = vrot.slane %v64, %v68
    %v70 = vlaneseq
    %v71 = vshrl.u32 %v70, 7
    %v72 = vsub.s32 1, %v71
    %v73 = vrot.slane %v64, %v72
    %v74 = vlaneseq
    %v75 = vshrl.u32 %v74, 7
    %v76 = vsub.s32 2, %v75
    %v77 = vrot.slane %v64, %v76
    %v78 = vlaneseq
    %v79 = vshrl.u32 %v78, 7
    %v80 = vsub.s32 3, %v79
    %v81 = vrot.slane %v64, %v80
    %vm86 = vcmask 64512
    %v88 = vsel %vm86, %v52, 0
    %v91 = vsel %vm86, %v53, 0
    %v94 = vsel %vm86, %v54, 0
    %v97 = vsel %vm86, %v55, 0
    %v100 = vsel %vm86, %v56, 0
    %v103 = vsel %vm86, %v57, 0
    %v106 = vsel %vm86, %v58, 0
    %v109 = vsel %vm86, %v59, 0
    %111 = vmatprep.subr.mxu0 %v61
    %112 = vmatpush1.msra.mxu0 %v60
    %113 = vmatprep.subr.mxu0 0.0
    %114 = vmatpush1.msra.mxu0 0.0
    %115 = vmatprep.subr.mxu0 0.0
    %116 = vmatpush1.msra.mxu0 0.0
    %117 = vmatprep.subr.mxu0 0.0
    %118 = vmatpush1.msra.mxu0 0.0
    %119 = vmatprep.subr.mxu0 0.0
    %120 = vmatpush1.msra.mxu0 0.0
    %121 = vmatprep.subr.mxu0 0.0
    %122 = vmatpush1.msra.mxu0 0.0
    %123 = vmatprep.subr.mxu0 0.0
    %124 = vmatpush1.msra.mxu0 0.0
    %125 = vmatprep.subr.mxu0 0.0
    %126 = vmatpush1.msra.mxu0 0.0
    %127 = vmatprep.subr.mxu0 0.0
    %128 = vmatpush1.msra.mxu0 0.0
    %129 = vmatprep.subr.mxu0 0.0
    %130 = vmatpush1.msra.mxu0 0.0
    %131 = vmatprep.subr.mxu0 0.0
    %132 = vmatpush1.msra.mxu0 0.0
    %133 = vmatprep.subr.mxu0 0.0
    %134 = vmatpush1.msra.mxu0 0.0
    %135 = vmatprep.subr.mxu0 0.0
    %136 = vmatpush1.msra.mxu0 0.0
    %137 = vmatprep.subr.mxu0 0.0
    %138 = vmatpush1.msra.mxu0 0.0
    %139 = vmatprep.subr.mxu0 0.0
    %140 = vmatpush1.msra.mxu0 0.0
    %141 = vmatprep.subr.mxu0 0.0
    %142 = vmatpush1.msra.mxu0 0.0
    %143 = vmatprep.subr.mxu0 0.0
    %144 = vmatpush1.msra.mxu0 0.0
    %145 = vmatprep.subr.mxu0 0.0
    %146 = vmatpush1.msra.mxu0 0.0
    %147 = vmatprep.subr.mxu0 0.0
    %148 = vmatpush1.msra.mxu0 0.0
    %149 = vmatprep.subr.mxu0 0.0
    %150 = vmatpush1.msra.mxu0 0.0
    %151 = vmatprep.subr.mxu0 0.0
    %152 = vmatpush1.msra.mxu0 0.0
    %153 = vmatprep.subr.mxu0 0.0
    %154 = vmatpush1.msra.mxu0 0.0
    %155 = vmatprep.subr.mxu0 0.0
    %156 = vmatpush1.msra.mxu0 0.0
    %157 = vmatprep.subr.mxu0 0.0
    %158 = vmatpush1.msra.mxu0 0.0
    %159 = vmatprep.subr.mxu0 0.0
    %160 = vmatpush1.msra.mxu0 0.0
    %161 = vmatprep.subr.mxu0 0.0
    %162 = vmatpush1.msra.mxu0 0.0
    %163 = vmatprep.subr.mxu0 0.0
    %164 = vmatpush1.msra.mxu0 0.0
    %165 = vmatprep.subr.mxu0 0.0
    %166 = vmatpush1.msra.mxu0 0.0
    %167 = vmatprep.subr.mxu0 0.0
    %168 = vmatpush1.msra.mxu0 0.0
    %169 = vmatprep.subr.mxu0 0.0
    %170 = vmatpush1.msra.mxu0 0.0
    %171 = vmatprep.subr.mxu0 0.0
    %172 = vmatpush1.msra.mxu0 0.0
    %173 = vmatprep.subr.mxu0 0.0
    %174 = vmatpush1.msra.mxu0 0.0
    %175 = vmatprep.mubr.f32.mxu0 0.0
    %176 = vmatmul.mubr.f32.gmra.mrb[0].mxu0 %v88
    %v177 = vpop.f32.mrb[0].mxu0
    %v178 = vadd.f32 %v69, %v177
    %v179 = vpop.f32.mrb[0].mxu0
    %v180 = vadd.f32 %v73, %v179
    %181 = vmatprep.mubr.f32.mxu0 0.0
    %182 = vmatmul.mubr.f32.gmra.mrb[0].mxu0 %v91
    %v183 = vpop.f32.mrb[0].mxu0
    %v184 = vadd.f32 %v69, %v183
    %v185 = vpop.f32.mrb[0].mxu0
    %v186 = vadd.f32 %v73, %v185
    %187 = vmatprep.mubr.f32.mxu0 0.0
    %188 = vmatmul.mubr.f32.gmra.mrb[0].mxu0 %v94
    %v189 = vpop.f32.mrb[0].mxu0
    %v190 = vadd.f32 %v69, %v189
    %v191 = vpop.f32.mrb[0].mxu0
    %v192 = vadd.f32 %v73, %v191
    %193 = vmatprep.mubr.f32.mxu0 0.0
    %194 = vmatmul.mubr.f32.gmra.mrb[0].mxu0 %v97
    %v195 = vpop.f32.mrb[0].mxu0
    %v196 = vadd.f32 %v69, %v195
    %v197 = vpop.f32.mrb[0].mxu0
    %v198 = vadd.f32 %v73, %v197
    %199 = vmatprep.mubr.f32.mxu0 0.0
    %200 = vmatmul.mubr.f32.gmra.mrb[0].mxu0 %v100
    %v201 = vpop.f32.mrb[0].mxu0
    %v202 = vadd.f32 %v69, %v201
    %v203 = vpop.f32.mrb[0].mxu0
    %v204 = vadd.f32 %v73, %v203
    %205 = vmatprep.mubr.f32.mxu0 0.0
    %206 = vmatmul.mubr.f32.gmra.mrb[0].mxu0 %v103
    %v207 = vpop.f32.mrb[0].mxu0
    %v208 = vadd.f32 %v69, %v207
    %v209 = vpop.f32.mrb[0].mxu0
    %v210 = vadd.f32 %v73, %v209
    %211 = vmatprep.mubr.f32.mxu0 0.0
    %212 = vmatmul.mubr.f32.gmra.mrb[0].mxu0 %v106
    %v213 = vpop.f32.mrb[0].mxu0
    %v214 = vadd.f32 %v69, %v213
    %v215 = vpop.f32.mrb[0].mxu0
    %v216 = vadd.f32 %v73, %v215
    %217 = vmatprep.mubr.f32.mxu0 0.0
    %218 = vmatmul.mubr.f32.gmra.mrb[0].mxu0 %v109
    %v219 = vpop.f32.mrb[0].mxu0
    %v220 = vadd.f32 %v69, %v219
    %v221 = vpop.f32.mrb[0].mxu0
    %v222 = vadd.f32 %v73, %v221
    %223 = vdwg.mxu0
    %224 = vmatprep.subr.mxu0 %v63
    %225 = vmatpush1.msra.mxu0 %v62
    %226 = vmatprep.subr.mxu0 0.0
    %227 = vmatpush1.msra.mxu0 0.0
    %228 = vmatprep.subr.mxu0 0.0
    %229 = vmatpush1.msra.mxu0 0.0
    %230 = vmatprep.subr.mxu0 0.0
    %231 = vmatpush1.msra.mxu0 0.0
    %232 = vmatprep.subr.mxu0 0.0
    %233 = vmatpush1.msra.mxu0 0.0
    %234 = vmatprep.subr.mxu0 0.0
    %235 = vmatpush1.msra.mxu0 0.0
    %236 = vmatprep.subr.mxu0 0.0
    %237 = vmatpush1.msra.mxu0 0.0
    %238 = vmatprep.subr.mxu0 0.0
    %239 = vmatpush1.msra.mxu0 0.0
    %240 = vmatprep.subr.mxu0 0.0
    %241 = vmatpush1.msra.mxu0 0.0
    %242 = vmatprep.subr.mxu0 0.0
    %243 = vmatpush1.msra.mxu0 0.0
    %244 = vmatprep.subr.mxu0 0.0
    %245 = vmatpush1.msra.mxu0 0.0
    %246 = vmatprep.subr.mxu0 0.0
    %247 = vmatpush1.msra.mxu0 0.0
    %248 = vmatprep.subr.mxu0 0.0
    %249 = vmatpush1.msra.mxu0 0.0
    %250 = vmatprep.subr.mxu0 0.0
    %251 = vmatpush1.msra.mxu0 0.0
    %252 = vmatprep.subr.mxu0 0.0
    %253 = vmatpush1.msra.mxu0 0.0
    %254 = vmatprep.subr.mxu0 0.0
    %255 = vmatpush1.msra.mxu0 0.0
    %256 = vmatprep.subr.mxu0 0.0
    %257 = vmatpush1.msra.mxu0 0.0
    %258 = vmatprep.subr.mxu0 0.0
    %259 = vmatpush1.msra.mxu0 0.0
    %260 = vmatprep.subr.mxu0 0.0
    %261 = vmatpush1.msra.mxu0 0.0
    %262 = vmatprep.subr.mxu0 0.0
    %263 = vmatpush1.msra.mxu0 0.0
    %264 = vmatprep.subr.mxu0 0.0
    %265 = vmatpush1.msra.mxu0 0.0
    %266 = vmatprep.subr.mxu0 0.0
    %267 = vmatpush1.msra.mxu0 0.0
    %268 = vmatprep.subr.mxu0 0.0
    %269 = vmatpush1.msra.mxu0 0.0
    %270 = vmatprep.subr.mxu0 0.0
    %271 = vmatpush1.msra.mxu0 0.0
    %272 = vmatprep.subr.mxu0 0.0
    %273 = vmatpush1.msra.mxu0 0.0
    %274 = vmatprep.subr.mxu0 0.0
    %275 = vmatpush1.msra.mxu0 0.0
    %276 = vmatprep.subr.mxu0 0.0
    %277 = vmatpush1.msra.mxu0 0.0
    %278 = vmatprep.subr.mxu0 0.0
    %279 = vmatpush1.msra.mxu0 0.0
    %280 = vmatprep.subr.mxu0 0.0
    %281 = vmatpush1.msra.mxu0 0.0
    %282 = vmatprep.subr.mxu0 0.0
    %283 = vmatpush1.msra.mxu0 0.0
    %284 = vmatprep.subr.mxu0 0.0
    %285 = vmatpush1.msra.mxu0 0.0
    %286 = vmatprep.subr.mxu0 0.0
    %287 = vmatpush1.msra.mxu0 0.0
    %288 = vmatprep.mubr.f32.mxu0 0.0
    %289 = vmatmul.mubr.f32.gmra.mrb[0].mxu0 %v88
    %v290 = vpop.f32.mrb[0].mxu0
    %v291 = vadd.f32 %v77, %v290
    %v292 = vpop.f32.mrb[0].mxu0
    %v293 = vadd.f32 %v81, %v292
    %294 = vmatprep.mubr.f32.mxu0 0.0
    %295 = vmatmul.mubr.f32.gmra.mrb[0].mxu0 %v91
    %v296 = vpop.f32.mrb[0].mxu0
    %v297 = vadd.f32 %v77, %v296
    %v298 = vpop.f32.mrb[0].mxu0
    %v299 = vadd.f32 %v81, %v298
    %300 = vmatprep.mubr.f32.mxu0 0.0
    %301 = vmatmul.mubr.f32.gmra.mrb[0].mxu0 %v94
    %v302 = vpop.f32.mrb[0].mxu0
    %v303 = vadd.f32 %v77, %v302
    %v304 = vpop.f32.mrb[0].mxu0
    %v305 = vadd.f32 %v81, %v304
    %306 = vmatprep.mubr.f32.mxu0 0.0
    %307 = vmatmul.mubr.f32.gmra.mrb[0].mxu0 %v97
    %v308 = vpop.f32.mrb[0].mxu0
    %v309 = vadd.f32 %v77, %v308
    %v310 = vpop.f32.mrb[0].mxu0
    %v311 = vadd.f32 %v81, %v310
    %312 = vmatprep.mubr.f32.mxu0 0.0
    %313 = vmatmul.mubr.f32.gmra.mrb[0].mxu0 %v100
    %v314 = vpop.f32.mrb[0].mxu0
    %v315 = vadd.f32 %v77, %v314
    %v316 = vpop.f32.mrb[0].mxu0
    %v317 = vadd.f32 %v81, %v316
    %318 = vmatprep.mubr.f32.mxu0 0.0
    %319 = vmatmul.mubr.f32.gmra.mrb[0].mxu0 %v103
    %v320 = vpop.f32.mrb[0].mxu0
    %v321 = vadd.f32 %v77, %v320
    %v322 = vpop.f32.mrb[0].mxu0
    %v323 = vadd.f32 %v81, %v322
    %324 = vmatprep.mubr.f32.mxu0 0.0
    %325 = vmatmul.mubr.f32.gmra.mrb[0].mxu0 %v106
    %v326 = vpop.f32.mrb[0].mxu0
    %v327 = vadd.f32 %v77, %v326
    %v328 = vpop.f32.mrb[0].mxu0
    %v329 = vadd.f32 %v81, %v328
    %330 = vmatprep.mubr.f32.mxu0 0.0
    %331 = vmatmul.mubr.f32.gmra.mrb[0].mxu0 %v109
    %v332 = vpop.f32.mrb[0].mxu0
    %v333 = vadd.f32 %v77, %v332
    %v334 = vpop.f32.mrb[0].mxu0
    %v335 = vadd.f32 %v81, %v334
    %336 = vdwg.mxu0
    %v337 = vld [vmem:[#allocation3] sm:$0xff]
    %v338 = vld [vmem:[#allocation3 + $0x8] sm:$0xff]
    %v339 = vld [vmem:[#allocation3 + $0x10] sm:$0xff]
    %v340 = vld [vmem:[#allocation3 + $0x18] sm:$0xff]
    %v341 = vld [vmem:[#allocation3 + $0x20] sm:$0xff]
    %v342 = vld [vmem:[#allocation3 + $0x28] sm:$0xff]
    %v343 = vld [vmem:[#allocation3 + $0x30] sm:$0xff]
    %v344 = vld [vmem:[#allocation3 + $0x38] sm:$0xff]
    %v345 = vld [vmem:[#allocation3 + $0x40] sm:$0xff]
    %v346 = vld [vmem:[#allocation3 + $0x48] sm:$0xff]
    %v347 = vld [vmem:[#allocation3 + $0x50] sm:$0xff]
    %v348 = vld [vmem:[#allocation3 + $0x58] sm:$0xff]
    %v349 = vld [vmem:[#allocation3 + $0x60] sm:$0xff]
    %v350 = vld [vmem:[#allocation3 + $0x68] sm:$0xff]
    %v351 = vld [vmem:[#allocation3 + $0x70] sm:$0xff]
    %v352 = vld [vmem:[#allocation3 + $0x78] sm:$0xff]
    %v353 = vld [vmem:[#allocation3 + $0x80] sm:$0xff]
    %v354 = vld [vmem:[#allocation3 + $0x88] sm:$0xff]
    %v355 = vld [vmem:[#allocation3 + $0x90] sm:$0xff]
    %v356 = vld [vmem:[#allocation3 + $0x98] sm:$0xff]
    %v357 = vld [vmem:[#allocation3 + $0xa0] sm:$0xff]
    %v358 = vld [vmem:[#allocation3 + $0xa8] sm:$0xff]
    %v359 = vld [vmem:[#allocation3 + $0xb0] sm:$0xff]
    %v360 = vld [vmem:[#allocation3 + $0xb8] sm:$0xff]
    %v361 = vld [vmem:[#allocation3 + $0xc0] sm:$0xff]
    %v362 = vld [vmem:[#allocation3 + $0xc8] sm:$0xff]
    %v363 = vld [vmem:[#allocation3 + $0xd0] sm:$0xff]
    %v364 = vld [vmem:[#allocation3 + $0xd8] sm:$0xff]
    %v365 = vld [vmem:[#allocation3 + $0xe0] sm:$0xff]
    %v366 = vld [vmem:[#allocation3 + $0xe8] sm:$0xff]
    %v367 = vld [vmem:[#allocation3 + $0xf0] sm:$0xff]
    %v368 = vld [vmem:[#allocation3 + $0xf8] sm:$0xff]
    %v369 = vld [vmem:[#allocation3 + $0x100] sm:$0xff]
    %v370 = vld [vmem:[#allocation3 + $0x108] sm:$0xff]
    %v371 = vld [vmem:[#allocation3 + $0x110] sm:$0xff]
    %v372 = vld [vmem:[#allocation3 + $0x118] sm:$0xff]
    %v373 = vld [vmem:[#allocation3 + $0x120] sm:$0xff]
    %v374 = vld [vmem:[#allocation3 + $0x128] sm:$0xff]
    %v375 = vld [vmem:[#allocation3 + $0x130] sm:$0xff]
    %v376 = vld [vmem:[#allocation3 + $0x138] sm:$0xff]
    %v377 = vld [vmem:[#allocation3 + $0x140] sm:$0xff]
    %v378 = vld [vmem:[#allocation3 + $0x148] sm:$0xff]
    %v379 = vld [vmem:[#allocation3 + $0x150] sm:$0xff]
    %v380 = vld [vmem:[#allocation3 + $0x158] sm:$0xff]
    %v381 = vld [vmem:[#allocation3 + $0x160] sm:$0xff]
    %v382 = vld [vmem:[#allocation3 + $0x168] sm:$0xff]
    %v383 = vld [vmem:[#allocation3 + $0x170] sm:$0xff]
    %v384 = vld [vmem:[#allocation3 + $0x178] sm:$0xff]
    %v385 = vld [vmem:[#allocation3 + $0x180] sm:$0xff]
    %v386 = vld [vmem:[#allocation3 + $0x188] sm:$0xff]
    %v387 = vld [vmem:[#allocation3 + $0x190] sm:$0xff]
    %v388 = vld [vmem:[#allocation3 + $0x198] sm:$0xff]
    %v389 = vld [vmem:[#allocation3 + $0x1a0] sm:$0xff]
    %v390 = vld [vmem:[#allocation3 + $0x1a8] sm:$0xff]
    %v391 = vld [vmem:[#allocation3 + $0x1b0] sm:$0xff]
    %v392 = vld [vmem:[#allocation3 + $0x1b8] sm:$0xff]
    %v393 = vld [vmem:[#allocation3 + $0x1c0] sm:$0xff]
    %v394 = vld [vmem:[#allocation3 + $0x1c8] sm:$0xff]
    %v395 = vld [vmem:[#allocation3 + $0x1d0] sm:$0xff]
    %v396 = vld [vmem:[#allocation3 + $0x1d8] sm:$0xff]
    %v397 = vld [vmem:[#allocation3 + $0x1e0] sm:$0xff]
    %v398 = vld [vmem:[#allocation3 + $0x1e8] sm:$0xff]
    %v399 = vld [vmem:[#allocation3 + $0x1f0] sm:$0xff]
    %v400 = vld [vmem:[#allocation3 + $0x1f8] sm:$0xff]
    %401 = vmatprep.subr.mxu0 %v338
    %402 = vmatpush1.msra.mxu0 %v337
    %403 = vmatprep.subr.mxu0 %v342
    %404 = vmatpush1.msra.mxu0 %v341
    %405 = vmatprep.subr.mxu0 %v346
    %406 = vmatpush1.msra.mxu0 %v345
    %407 = vmatprep.subr.mxu0 %v350
    %408 = vmatpush1.msra.mxu0 %v349
    %409 = vmatprep.subr.mxu0 %v354
    %410 = vmatpush1.msra.mxu0 %v353
    %411 = vmatprep.subr.mxu0 %v358
    %412 = vmatpush1.msra.mxu0 %v357
    %413 = vmatprep.subr.mxu0 %v362
    %414 = vmatpush1.msra.mxu0 %v361
    %415 = vmatprep.subr.mxu0 %v366
    %416 = vmatpush1.msra.mxu0 %v365
    %417 = vmatprep.subr.mxu0 %v370
    %418 = vmatpush1.msra.mxu0 %v369
    %419 = vmatprep.subr.mxu0 %v374
    %420 = vmatpush1.msra.mxu0 %v373
    %421 = vmatprep.subr.mxu0 %v378
    %422 = vmatpush1.msra.mxu0 %v377
    %423 = vmatprep.subr.mxu0 %v382
    %424 = vmatpush1.msra.mxu0 %v381
    %425 = vmatprep.subr.mxu0 %v386
    %426 = vmatpush1.msra.mxu0 %v385
    %427 = vmatprep.subr.mxu0 %v390
    %428 = vmatpush1.msra.mxu0 %v389
    %429 = vmatprep.subr.mxu0 %v394
    %430 = vmatpush1.msra.mxu0 %v393
    %431 = vmatprep.subr.mxu0 %v398
    %432 = vmatpush1.msra.mxu0 %v397
    %433 = vmatprep.subr.mxu0 0.0
    %434 = vmatpush1.msra.mxu0 0.0
    %435 = vmatprep.subr.mxu0 0.0
    %436 = vmatpush1.msra.mxu0 0.0
    %437 = vmatprep.subr.mxu0 0.0
    %438 = vmatpush1.msra.mxu0 0.0
    %439 = vmatprep.subr.mxu0 0.0
    %440 = vmatpush1.msra.mxu0 0.0
    %441 = vmatprep.subr.mxu0 0.0
    %442 = vmatpush1.msra.mxu0 0.0
    %443 = vmatprep.subr.mxu0 0.0
    %444 = vmatpush1.msra.mxu0 0.0
    %445 = vmatprep.subr.mxu0 0.0
    %446 = vmatpush1.msra.mxu0 0.0
    %447 = vmatprep.subr.mxu0 0.0
    %448 = vmatpush1.msra.mxu0 0.0
    %449 = vmatprep.subr.mxu0 0.0
    %450 = vmatpush1.msra.mxu0 0.0
    %451 = vmatprep.subr.mxu0 0.0
    %452 = vmatpush1.msra.mxu0 0.0
    %453 = vmatprep.subr.mxu0 0.0
    %454 = vmatpush1.msra.mxu0 0.0
    %455 = vmatprep.subr.mxu0 0.0
    %456 = vmatpush1.msra.mxu0 0.0
    %457 = vmatprep.subr.mxu0 0.0
    %458 = vmatpush1.msra.mxu0 0.0
    %459 = vmatprep.subr.mxu0 0.0
    %460 = vmatpush1.msra.mxu0 0.0
    %461 = vmatprep.subr.mxu0 0.0
    %462 = vmatpush1.msra.mxu0 0.0
    %463 = vmatprep.subr.mxu0 0.0
    %464 = vmatpush1.msra.mxu0 0.0
    %465 = vmatprep.mubr.f32.mxu0 0.0
    %466 = vmatmul.mubr.f32.gmra.mrb[0].mxu0 0.0
    %v467 = vpop.f32.mrb[0].mxu0
    %v468 = vadd.f32 0.0, %v467
    %v469 = vpop.f32.mrb[0].mxu0
    %v470 = vadd.f32 0.0, %v469
    %471 = vdwg.mxu0
    %472 = vmatprep.subr.mxu0 %v340
    %473 = vmatpush1.msra.mxu0 %v339
    %474 = vmatprep.subr.mxu0 %v344
    %475 = vmatpush1.msra.mxu0 %v343
    %476 = vmatprep.subr.mxu0 %v348
    %477 = vmatpush1.msra.mxu0 %v347
    %478 = vmatprep.subr.mxu0 %v352
    %479 = vmatpush1.msra.mxu0 %v351
    %480 = vmatprep.subr.mxu0 %v356
    %481 = vmatpush1.msra.mxu0 %v355
    %482 = vmatprep.subr.mxu0 %v360
    %483 = vmatpush1.msra.mxu0 %v359
    %484 = vmatprep.subr.mxu0 %v364
    %485 = vmatpush1.msra.mxu0 %v363
    %486 = vmatprep.subr.mxu0 %v368
    %487 = vmatpush1.msra.mxu0 %v367
    %488 = vmatprep.subr.mxu0 %v372
    %489 = vmatpush1.msra.mxu0 %v371
    %490 = vmatprep.subr.mxu0 %v376
    %491 = vmatpush1.msra.mxu0 %v375
    %492 = vmatprep.subr.mxu0 %v380
    %493 = vmatpush1.msra.mxu0 %v379
    %494 = vmatprep.subr.mxu0 %v384
    %495 = vmatpush1.msra.mxu0 %v383
    %496 = vmatprep.subr.mxu0 %v388
    %497 = vmatpush1.msra.mxu0 %v387
    %498 = vmatprep.subr.mxu0 %v392
    %499 = vmatpush1.msra.mxu0 %v391
    %500 = vmatprep.subr.mxu0 %v396
    %501 = vmatpush1.msra.mxu0 %v395
    %502 = vmatprep.subr.mxu0 %v400
    %503 = vmatpush1.msra.mxu0 %v399
    %504 = vmatprep.subr.mxu0 0.0
    %505 = vmatpush1.msra.mxu0 0.0
    %506 = vmatprep.subr.mxu0 0.0
    %507 = vmatpush1.msra.mxu0 0.0
    %508 = vmatprep.subr.mxu0 0.0
    %509 = vmatpush1.msra.mxu0 0.0
    %510 = vmatprep.subr.mxu0 0.0
    %511 = vmatpush1.msra.mxu0 0.0
    %512 = vmatprep.subr.mxu0 0.0
    %513 = vmatpush1.msra.mxu0 0.0
    %514 = vmatprep.subr.mxu0 0.0
    %515 = vmatpush1.msra.mxu0 0.0
    %516 = vmatprep.subr.mxu0 0.0
    %517 = vmatpush1.msra.mxu0 0.0
    %518 = vmatprep.subr.mxu0 0.0
    %519 = vmatpush1.msra.mxu0 0.0
    %520 = vmatprep.subr.mxu0 0.0
    %521 = vmatpush1.msra.mxu0 0.0
    %522 = vmatprep.subr.mxu0 0.0
    %523 = vmatpush1.msra.mxu0 0.0
    %524 = vmatprep.subr.mxu0 0.0
    %525 = vmatpush1.msra.mxu0 0.0
    %526 = vmatprep.subr.mxu0 0.0
    %527 = vmatpush1.msra.mxu0 0.0
    %528 = vmatprep.subr.mxu0 0.0
    %529 = vmatpush1.msra.mxu0 0.0
    %530 = vmatprep.subr.mxu0 0.0
    %531 = vmatpush1.msra.mxu0 0.0
    %532 = vmatprep.subr.mxu0 0.0
    %533 = vmatpush1.msra.mxu0 0.0
    %534 = vmatprep.subr.mxu0 0.0
    %535 = vmatpush1.msra.mxu0 0.0
    %536 = vmatprep.mubr.f32.mxu0 0.0
    %537 = vmatmul.mubr.f32.gmra.mrb[0].mxu0 0.0
    %v538 = vpop.f32.mrb[0].mxu0
    %v539 = vadd.f32 0.0, %v538
    %v540 = vpop.f32.mrb[0].mxu0
    %v541 = vadd.f32 0.0, %v540
    %542 = vdwg.mxu0
    %v543 = vadd.f32 %v178, %v468
    %v544 = vadd.f32 %v180, %v470
    %v545 = vadd.f32 %v291, %v539
    %v546 = vadd.f32 %v293, %v541
    %v547 = vxor.u32 %v543, 2147483648
    %v548 = vmul.f32 %v547, 1.442695
    %v549 = vpow.pop %v548
    %v550 = vadd.f32 %v549, 1.0
    %v551 = vrcp.pop %v550
    %v552 = vmul.f32 1.0, %v551
    %v553 = vxor.u32 %v544, 2147483648
    %v554 = vmul.f32 %v553, 1.442695
    %v555 = vpow.pop %v554
    %v556 = vadd.f32 %v555, 1.0
    %v557 = vrcp.pop %v556
    %v558 = vmul.f32 1.0, %v557
    %v559 = vtanh.pop %v545
    %v560 = vxor.u32 %v546, 2147483648
    %v561 = vmul.f32 %v560, 1.442695
    %v562 = vpow.pop %v561
    %v563 = vadd.f32 %v562, 1.0
    %v564 = vrcp.pop %v563
    %v565 = vmul.f32 1.0, %v564
    %v566 = vmul.f32 %v558, 0.0
    %v567 = vmul.f32 %v552, %v559
    %v568 = vadd.f32 %v566, %v567
    %v569 = vtanh.pop %v568
    %v570 = vmul.f32 %v565, %v569
    %571 = vst [vmem:[#allocation2] sm:$0xff] %v570
    %v572 = vld [vmem:[#allocation3] sm:$0xff]
    %v573 = vld [vmem:[#allocation3 + $0x8] sm:$0xff]
    %v574 = vld [vmem:[#allocation3 + $0x10] sm:$0xff]
    %v575 = vld [vmem:[#allocation3 + $0x18] sm:$0xff]
    %v576 = vld [vmem:[#allocation3 + $0x20] sm:$0xff]
    %v577 = vld [vmem:[#allocation3 + $0x28] sm:$0xff]
    %v578 = vld [vmem:[#allocation3 + $0x30] sm:$0xff]
    %v579 = vld [vmem:[#allocation3 + $0x38] sm:$0xff]
    %v580 = vld [vmem:[#allocation3 + $0x40] sm:$0xff]
    %v581 = vld [vmem:[#allocation3 + $0x48] sm:$0xff]
    %v582 = vld [vmem:[#allocation3 + $0x50] sm:$0xff]
    %v583 = vld [vmem:[#allocation3 + $0x58] sm:$0xff]
    %v584 = vld [vmem:[#allocation3 + $0x60] sm:$0xff]
    %v585 = vld [vmem:[#allocation3 + $0x68] sm:$0xff]
    %v586 = vld [vmem:[#allocation3 + $0x70] sm:$0xff]
    %v587 = vld [vmem:[#allocation3 + $0x78] sm:$0xff]
    %v588 = vld [vmem:[#allocation3 + $0x80] sm:$0xff]
    %v589 = vld [vmem:[#allocation3 + $0x88] sm:$0xff]
    %v590 = vld [vmem:[#allocation3 + $0x90] sm:$0xff]
    %v591 = vld [vmem:[#allocation3 + $0x98] sm:$0xff]
    %v592 = vld [vmem:[#allocation3 + $0xa0] sm:$0xff]
    %v593 = vld [vmem:[#allocation3 + $0xa8] sm:$0xff]
    %v594 = vld [vmem:[#allocation3 + $0xb0] sm:$0xff]
    %v595 = vld [vmem:[#allocation3 + $0xb8] sm:$0xff]
    %v596 = vld [vmem:[#allocation3 + $0xc0] sm:$0xff]
    %v597 = vld [vmem:[#allocation3 + $0xc8] sm:$0xff]
    %v598 = vld [vmem:[#allocation3 + $0xd0] sm:$0xff]
    %v599 = vld [vmem:[#allocation3 + $0xd8] sm:$0xff]
    %v600 = vld [vmem:[#allocation3 + $0xe0] sm:$0xff]
    %v601 = vld [vmem:[#allocation3 + $0xe8] sm:$0xff]
    %v602 = vld [vmem:[#allocation3 + $0xf0] sm:$0xff]
    %v603 = vld [vmem:[#allocation3 + $0xf8] sm:$0xff]
    %v604 = vld [vmem:[#allocation3 + $0x100] sm:$0xff]
    %v605 = vld [vmem:[#allocation3 + $0x108] sm:$0xff]
    %v606 = vld [vmem:[#allocation3 + $0x110] sm:$0xff]
    %v607 = vld [vmem:[#allocation3 + $0x118] sm:$0xff]
    %v608 = vld [vmem:[#allocation3 + $0x120] sm:$0xff]
    %v609 = vld [vmem:[#allocation3 + $0x128] sm:$0xff]
    %v610 = vld [vmem:[#allocation3 + $0x130] sm:$0xff]
    %v611 = vld [vmem:[#allocation3 + $0x138] sm:$0xff]
    %v612 = vld [vmem:[#allocation3 + $0x140] sm:$0xff]
    %v613 = vld [vmem:[#allocation3 + $0x148] sm:$0xff]
    %v614 = vld [vmem:[#allocation3 + $0x150] sm:$0xff]
    %v615 = vld [vmem:[#allocation3 + $0x158] sm:$0xff]
    %v616 = vld [vmem:[#allocation3 + $0x160] sm:$0xff]
    %v617 = vld [vmem:[#allocation3 + $0x168] sm:$0xff]
    %v618 = vld [vmem:[#allocation3 + $0x170] sm:$0xff]
    %v619 = vld [vmem:[#allocation3 + $0x178] sm:$0xff]
    %v620 = vld [vmem:[#allocation3 + $0x180] sm:$0xff]
    %v621 = vld [vmem:[#allocation3 + $0x188] sm:$0xff]
    %v622 = vld [vmem:[#allocation3 + $0x190] sm:$0xff]
    %v623 = vld [vmem:[#allocation3 + $0x198] sm:$0xff]
    %v624 = vld [vmem:[#allocation3 + $0x1a0] sm:$0xff]
    %v625 = vld [vmem:[#allocation3 + $0x1a8] sm:$0xff]
    %v626 = vld [vmem:[#allocation3 + $0x1b0] sm:$0xff]
    %v627 = vld [vmem:[#allocation3 + $0x1b8] sm:$0xff]
    %v628 = vld [vmem:[#allocation3 + $0x1c0] sm:$0xff]
    %v629 = vld [vmem:[#allocation3 + $0x1c8] sm:$0xff]
    %v630 = vld [vmem:[#allocation3 + $0x1d0] sm:$0xff]
    %v631 = vld [vmem:[#allocation3 + $0x1d8] sm:$0xff]
    %v632 = vld [vmem:[#allocation3 + $0x1e0] sm:$0xff]
    %v633 = vld [vmem:[#allocation3 + $0x1e8] sm:$0xff]
    %v634 = vld [vmem:[#allocation3 + $0x1f0] sm:$0xff]
    %v635 = vld [vmem:[#allocation3 + $0x1f8] sm:$0xff]
    %636 = vmatprep.subr.mxu0 %v573
    %637 = vmatpush1.msra.mxu0 %v572
    %638 = vmatprep.subr.mxu0 %v577
    %639 = vmatpush1.msra.mxu0 %v576
    %640 = vmatprep.subr.mxu0 %v581
    %641 = vmatpush1.msra.mxu0 %v580
    %642 = vmatprep.subr.mxu0 %v585
    %643 = vmatpush1.msra.mxu0 %v584
    %644 = vmatprep.subr.mxu0 %v589
    %645 = vmatpush1.msra.mxu0 %v588
    %646 = vmatprep.subr.mxu0 %v593
    %647 = vmatpush1.msra.mxu0 %v592
    %648 = vmatprep.subr.mxu0 %v597
    %649 = vmatpush1.msra.mxu0 %v596
    %650 = vmatprep.subr.mxu0 %v601
    %651 = vmatpush1.msra.mxu0 %v600
    %652 = vmatprep.subr.mxu0 %v605
    %653 = vmatpush1.msra.mxu0 %v604
    %654 = vmatprep.subr.mxu0 %v609
    %655 = vmatpush1.msra.mxu0 %v608
    %656 = vmatprep.subr.mxu0 %v613
    %657 = vmatpush1.msra.mxu0 %v612
    %658 = vmatprep.subr.mxu0 %v617
    %659 = vmatpush1.msra.mxu0 %v616
    %660 = vmatprep.subr.mxu0 %v621
    %661 = vmatpush1.msra.mxu0 %v620
    %662 = vmatprep.subr.mxu0 %v625
    %663 = vmatpush1.msra.mxu0 %v624
    %664 = vmatprep.subr.mxu0 %v629
    %665 = vmatpush1.msra.mxu0 %v628
    %666 = vmatprep.subr.mxu0 %v633
    %667 = vmatpush1.msra.mxu0 %v632
    %668 = vmatprep.subr.mxu0 0.0
    %669 = vmatpush1.msra.mxu0 0.0
    %670 = vmatprep.subr.mxu0 0.0
    %671 = vmatpush1.msra.mxu0 0.0
    %672 = vmatprep.subr.mxu0 0.0
    %673 = vmatpush1.msra.mxu0 0.0
    %674 = vmatprep.subr.mxu0 0.0
    %675 = vmatpush1.msra.mxu0 0.0
    %676 = vmatprep.subr.mxu0 0.0
    %677 = vmatpush1.msra.mxu0 0.0
    %678 = vmatprep.subr.mxu0 0.0
    %679 = vmatpush1.msra.mxu0 0.0
    %680 = vmatprep.subr.mxu0 0.0
    %681 = vmatpush1.msra.mxu0 0.0
    %682 = vmatprep.subr.mxu0 0.0
    %683 = vmatpush1.msra.mxu0 0.0
    %684 = vmatprep.subr.mxu0 0.0
    %685 = vmatpush1.msra.mxu0 0.0
    %686 = vmatprep.subr.mxu0 0.0
    %687 = vmatpush1.msra.mxu0 0.0
    %688 = vmatprep.subr.mxu0 0.0
    %689 = vmatpush1.msra.mxu0 0.0
    %690 = vmatprep.subr.mxu0 0.0
    %691 = vmatpush1.msra.mxu0 0.0
    %692 = vmatprep.subr.mxu0 0.0
    %693 = vmatpush1.msra.mxu0 0.0
    %694 = vmatprep.subr.mxu0 0.0
    %695 = vmatpush1.msra.mxu0 0.0
    %696 = vmatprep.subr.mxu0 0.0
    %697 = vmatpush1.msra.mxu0 0.0
    %698 = vmatprep.subr.mxu0 0.0
    %699 = vmatpush1.msra.mxu0 0.0
    %700 = vmatprep.mubr.f32.mxu0 0.0
    %701 = vmatmul.mubr.f32.gmra.mrb[0].mxu0 %v570
    %v702 = vpop.f32.mrb[0].mxu0
    %v703 = vadd.f32 0.0, %v702
    %v704 = vpop.f32.mrb[0].mxu0
    %v705 = vadd.f32 0.0, %v704
    %706 = vdwg.mxu0
    %707 = vmatprep.subr.mxu0 %v575
    %708 = vmatpush1.msra.mxu0 %v574
    %709 = vmatprep.subr.mxu0 %v579
    %710 = vmatpush1.msra.mxu0 %v578
    %711 = vmatprep.subr.mxu0 %v583
    %712 = vmatpush1.msra.mxu0 %v582
    %713 = vmatprep.subr.mxu0 %v587
    %714 = vmatpush1.msra.mxu0 %v586
    %715 = vmatprep.subr.mxu0 %v591
    %716 = vmatpush1.msra.mxu0 %v590
    %717 = vmatprep.subr.mxu0 %v595
    %718 = vmatpush1.msra.mxu0 %v594
    %719 = vmatprep.subr.mxu0 %v599
    %720 = vmatpush1.msra.mxu0 %v598
    %721 = vmatprep.subr.mxu0 %v603
    %722 = vmatpush1.msra.mxu0 %v602
    %723 = vmatprep.subr.mxu0 %v607
    %724 = vmatpush1.msra.mxu0 %v606
    %725 = vmatprep.subr.mxu0 %v611
    %726 = vmatpush1.msra.mxu0 %v610
    %727 = vmatprep.subr.mxu0 %v615
    %728 = vmatpush1.msra.mxu0 %v614
    %729 = vmatprep.subr.mxu0 %v619
    %730 = vmatpush1.msra.mxu0 %v618
    %731 = vmatprep.subr.mxu0 %v623
    %732 = vmatpush1.msra.mxu0 %v622
    %733 = vmatprep.subr.mxu0 %v627
    %734 = vmatpush1.msra.mxu0 %v626
    %735 = vmatprep.subr.mxu0 %v631
    %736 = vmatpush1.msra.mxu0 %v630
    %737 = vmatprep.subr.mxu0 %v635
    %738 = vmatpush1.msra.mxu0 %v634
    %739 = vmatprep.subr.mxu0 0.0
    %740 = vmatpush1.msra.mxu0 0.0
    %741 = vmatprep.subr.mxu0 0.0
    %742 = vmatpush1.msra.mxu0 0.0
    %743 = vmatprep.subr.mxu0 0.0
    %744 = vmatpush1.msra.mxu0 0.0
    %745 = vmatprep.subr.mxu0 0.0
    %746 = vmatpush1.msra.mxu0 0.0
    %747 = vmatprep.subr.mxu0 0.0
    %748 = vmatpush1.msra.mxu0 0.0
    %749 = vmatprep.subr.mxu0 0.0
    %750 = vmatpush1.msra.mxu0 0.0
    %751 = vmatprep.subr.mxu0 0.0
    %752 = vmatpush1.msra.mxu0 0.0
    %753 = vmatprep.subr.mxu0 0.0
    %754 = vmatpush1.msra.mxu0 0.0
    %755 = vmatprep.subr.mxu0 0.0
    %756 = vmatpush1.msra.mxu0 0.0
    %757 = vmatprep.subr.mxu0 0.0
    %758 = vmatpush1.msra.mxu0 0.0
    %759 = vmatprep.subr.mxu0 0.0
    %760 = vmatpush1.msra.mxu0 0.0
    %761 = vmatprep.subr.mxu0 0.0
    %762 = vmatpush1.msra.mxu0 0.0
    %763 = vmatprep.subr.mxu0 0.0
    %764 = vmatpush1.msra.mxu0 0.0
    %765 = vmatprep.subr.mxu0 0.0
    %766 = vmatpush1.msra.mxu0 0.0
    %767 = vmatprep.subr.mxu0 0.0
    %768 = vmatpush1.msra.mxu0 0.0
    %769 = vmatprep.subr.mxu0 0.0
    %770 = vmatpush1.msra.mxu0 0.0
    %771 = vmatprep.mubr.f32.mxu0 0.0
    %772 = vmatmul.mubr.f32.gmra.mrb[0].mxu0 %v570
    %v773 = vpop.f32.mrb[0].mxu0
    %v774 = vadd.f32 0.0, %v773
    %v775 = vpop.f32.mrb[0].mxu0
    %v776 = vadd.f32 0.0, %v775
    %777 = vdwg.mxu0
    %v778 = vadd.f32 %v184, %v703
    %v779 = vadd.f32 %v186, %v705
    %v780 = vadd.f32 %v297, %v774
    %v781 = vadd.f32 %v299, %v776
    %v782 = vxor.u32 %v778, 2147483648
    %v783 = vmul.f32 %v782, 1.442695
    %v784 = vpow.pop %v783
    %v785 = vadd.f32 %v784, 1.0
    %v786 = vrcp.pop %v785
    %v787 = vmul.f32 1.0, %v786
    %v788 = vxor.u32 %v779, 2147483648
    %v789 = vmul.f32 %v788, 1.442695
    %v790 = vpow.pop %v789
    %v791 = vadd.f32 %v790, 1.0
    %v792 = vrcp.pop %v791
    %v793 = vmul.f32 1.0, %v792
    %v794 = vtanh.pop %v780
    %v795 = vxor.u32 %v781, 2147483648
    %v796 = vmul.f32 %v795, 1.442695
    %v797 = vpow.pop %v796
    %v798 = vadd.f32 %v797, 1.0
    %v799 = vrcp.pop %v798
    %v800 = vmul.f32 1.0, %v799
    %v801 = vmul.f32 %v793, %v568
    %v802 = vmul.f32 %v787, %v794
    %v803 = vadd.f32 %v801, %v802
    %v804 = vtanh.pop %v803
    %v805 = vmul.f32 %v800, %v804
    %806 = vst [vmem:[#allocation2 + $0x8] sm:$0xff] %v805
    %v807 = vld [vmem:[#allocation3] sm:$0xff]
    %v808 = vld [vmem:[#allocation3 + $0x8] sm:$0xff]
    %v809 = vld [vmem:[#allocation3 + $0x10] sm:$0xff]
    %v810 = vld [vmem:[#allocation3 + $0x18] sm:$0xff]
    %v811 = vld [vmem:[#allocation3 + $0x20] sm:$0xff]
    %v812 = vld [vmem:[#allocation3 + $0x28] sm:$0xff]
    %v813 = vld [vmem:[#allocation3 + $0x30] sm:$0xff]
    %v814 = vld [vmem:[#allocation3 + $0x38] sm:$0xff]
    %v815 = vld [vmem:[#allocation3 + $0x40] sm:$0xff]
    %v816 = vld [vmem:[#allocation3 + $0x48] sm:$0xff]
    %v817 = vld [vmem:[#allocation3 + $0x50] sm:$0xff]
    %v818 = vld [vmem:[#allocation3 + $0x58] sm:$0xff]
    %v819 = vld [vmem:[#allocation3 + $0x60] sm:$0xff]
    %v820 = vld [vmem:[#allocation3 + $0x68] sm:$0xff]
    %v821 = vld [vmem:[#allocation3 + $0x70] sm:$0xff]
    %v822 = vld [vmem:[#allocation3 + $0x78] sm:$0xff]
    %v823 = vld [vmem:[#allocation3 + $0x80] sm:$0xff]
    %v824 = vld [vmem:[#allocation3 + $0x88] sm:$0xff]
    %v825 = vld [vmem:[#allocation3 + $0x90] sm:$0xff]
    %v826 = vld [vmem:[#allocation3 + $0x98] sm:$0xff]
    %v827 = vld [vmem:[#allocation3 + $0xa0] sm:$0xff]
    %v828 = vld [vmem:[#allocation3 + $0xa8] sm:$0xff]
    %v829 = vld [vmem:[#allocation3 + $0xb0] sm:$0xff]
    %v830 = vld [vmem:[#allocation3 + $0xb8] sm:$0xff]
    %v831 = vld [vmem:[#allocation3 + $0xc0] sm:$0xff]
    %v832 = vld [vmem:[#allocation3 + $0xc8] sm:$0xff]
    %v833 = vld [vmem:[#allocation3 + $0xd0] sm:$0xff]
    %v834 = vld [vmem:[#allocation3 + $0xd8] sm:$0xff]
    %v835 = vld [vmem:[#allocation3 + $0xe0] sm:$0xff]
    %v836 = vld [vmem:[#allocation3 + $0xe8] sm:$0xff]
    %v837 = vld [vmem:[#allocation3 + $0xf0] sm:$0xff]
    %v838 = vld [vmem:[#allocation3 + $0xf8] sm:$0xff]
    %v839 = vld [vmem:[#allocation3 + $0x100] sm:$0xff]
    %v840 = vld [vmem:[#allocation3 + $0x108] sm:$0xff]
    %v841 = vld [vmem:[#allocation3 + $0x110] sm:$0xff]
    %v842 = vld [vmem:[#allocation3 + $0x118] sm:$0xff]
    %v843 = vld [vmem:[#allocation3 + $0x120] sm:$0xff]
    %v844 = vld [vmem:[#allocation3 + $0x128] sm:$0xff]
    %v845 = vld [vmem:[#allocation3 + $0x130] sm:$0xff]
    %v846 = vld [vmem:[#allocation3 + $0x138] sm:$0xff]
    %v847 = vld [vmem:[#allocation3 + $0x140] sm:$0xff]
    %v848 = vld [vmem:[#allocation3 + $0x148] sm:$0xff]
    %v849 = vld [vmem:[#allocation3 + $0x150] sm:$0xff]
    %v850 = vld [vmem:[#allocation3 + $0x158] sm:$0xff]
    %v851 = vld [vmem:[#allocation3 + $0x160] sm:$0xff]
    %v852 = vld [vmem:[#allocation3 + $0x168] sm:$0xff]
    %v853 = vld [vmem:[#allocation3 + $0x170] sm:$0xff]
    %v854 = vld [vmem:[#allocation3 + $0x178] sm:$0xff]
    %v855 = vld [vmem:[#allocation3 + $0x180] sm:$0xff]
    %v856 = vld [vmem:[#allocation3 + $0x188] sm:$0xff]
    %v857 = vld [vmem:[#allocation3 + $0x190] sm:$0xff]
    %v858 = vld [vmem:[#allocation3 + $0x198] sm:$0xff]
    %v859 = vld [vmem:[#allocation3 + $0x1a0] sm:$0xff]
    %v860 = vld [vmem:[#allocation3 + $0x1a8] sm:$0xff]
    %v861 = vld [vmem:[#allocation3 + $0x1b0] sm:$0xff]
    %v862 = vld [vmem:[#allocation3 + $0x1b8] sm:$0xff]
    %v863 = vld [vmem:[#allocation3 + $0x1c0] sm:$0xff]
    %v864 = vld [vmem:[#allocation3 + $0x1c8] sm:$0xff]
    %v865 = vld [vmem:[#allocation3 + $0x1d0] sm:$0xff]
    %v866 = vld [vmem:[#allocation3 + $0x1d8] sm:$0xff]
    %v867 = vld [vmem:[#allocation3 + $0x1e0] sm:$0xff]
    %v868 = vld [vmem:[#allocation3 + $0x1e8] sm:$0xff]
    %v869 = vld [vmem:[#allocation3 + $0x1f0] sm:$0xff]
    %v870 = vld [vmem:[#allocation3 + $0x1f8] sm:$0xff]
    %871 = vmatprep.subr.mxu0 %v808
    %872 = vmatpush1.msra.mxu0 %v807
    %873 = vmatprep.subr.mxu0 %v812
    %874 = vmatpush1.msra.mxu0 %v811
    %875 = vmatprep.subr.mxu0 %v816
    %876 = vmatpush1.msra.mxu0 %v815
    %877 = vmatprep.subr.mxu0 %v820
    %878 = vmatpush1.msra.mxu0 %v819
    %879 = vmatprep.subr.mxu0 %v824
    %880 = vmatpush1.msra.mxu0 %v823
    %881 = vmatprep.subr.mxu0 %v828
    %882 = vmatpush1.msra.mxu0 %v827
    %883 = vmatprep.subr.mxu0 %v832
    %884 = vmatpush1.msra.mxu0 %v831
    %885 = vmatprep.subr.mxu0 %v836
    %886 = vmatpush1.msra.mxu0 %v835
    %887 = vmatprep.subr.mxu0 %v840
    %888 = vmatpush1.msra.mxu0 %v839
    %889 = vmatprep.subr.mxu0 %v844
    %890 = vmatpush1.msra.mxu0 %v843
    %891 = vmatprep.subr.mxu0 %v848
    %892 = vmatpush1.msra.mxu0 %v847
    %893 = vmatprep.subr.mxu0 %v852
    %894 = vmatpush1.msra.mxu0 %v851
    %895 = vmatprep.subr.mxu0 %v856
    %896 = vmatpush1.msra.mxu0 %v855
    %897 = vmatprep.subr.mxu0 %v860
    %898 = vmatpush1.msra.mxu0 %v859
    %899 = vmatprep.subr.mxu0 %v864
    %900 = vmatpush1.msra.mxu0 %v863
    %901 = vmatprep.subr.mxu0 %v868
    %902 = vmatpush1.msra.mxu0 %v867
    %903 = vmatprep.subr.mxu0 0.0
    %904 = vmatpush1.msra.mxu0 0.0
    %905 = vmatprep.subr.mxu0 0.0
    %906 = vmatpush1.msra.mxu0 0.0
    %907 = vmatprep.subr.mxu0 0.0
    %908 = vmatpush1.msra.mxu0 0.0
    %909 = vmatprep.subr.mxu0 0.0
    %910 = vmatpush1.msra.mxu0 0.0
    %911 = vmatprep.subr.mxu0 0.0
    %912 = vmatpush1.msra.mxu0 0.0
    %913 = vmatprep.subr.mxu0 0.0
    %914 = vmatpush1.msra.mxu0 0.0
    %915 = vmatprep.subr.mxu0 0.0
    %916 = vmatpush1.msra.mxu0 0.0
    %917 = vmatprep.subr.mxu0 0.0
    %918 = vmatpush1.msra.mxu0 0.0
    %919 = vmatprep.subr.mxu0 0.0
    %920 = vmatpush1.msra.mxu0 0.0
    %921 = vmatprep.subr.mxu0 0.0
    %922 = vmatpush1.msra.mxu0 0.0
    %923 = vmatprep.subr.mxu0 0.0
    %924 = vmatpush1.msra.mxu0 0.0
    %925 = vmatprep.subr.mxu0 0.0
    %926 = vmatpush1.msra.mxu0 0.0
    %927 = vmatprep.subr.mxu0 0.0
    %928 = vmatpush1.msra.mxu0 0.0
    %929 = vmatprep.subr.mxu0 0.0
    %930 = vmatpush1.msra.mxu0 0.0
    %931 = vmatprep.subr.mxu0 0.0
    %932 = vmatpush1.msra.mxu0 0.0
    %933 = vmatprep.subr.mxu0 0.0
    %934 = vmatpush1.msra.mxu0 0.0
    %935 = vmatprep.mubr.f32.mxu0 0.0
    %936 = vmatmul.mubr.f32.gmra.mrb[0].mxu0 %v805
    %v937 = vpop.f32.mrb[0].mxu0
    %v938 = vadd.f32 0.0, %v937
    %v939 = vpop.f32.mrb[0].mxu0
    %v940 = vadd.f32 0.0, %v939
    %941 = vdwg.mxu0
    %942 = vmatprep.subr.mxu0 %v810
    %943 = vmatpush1.msra.mxu0 %v809
    %944 = vmatprep.subr.mxu0 %v814
    %945 = vmatpush1.msra.mxu0 %v813
    %946 = vmatprep.subr.mxu0 %v818
    %947 = vmatpush1.msra.mxu0 %v817
    %948 = vmatprep.subr.mxu0 %v822
    %949 = vmatpush1.msra.mxu0 %v821
    %950 = vmatprep.subr.mxu0 %v826
    %951 = vmatpush1.msra.mxu0 %v825
    %952 = vmatprep.subr.mxu0 %v830
    %953 = vmatpush1.msra.mxu0 %v829
    %954 = vmatprep.subr.mxu0 %v834
    %955 = vmatpush1.msra.mxu0 %v833
    %956 = vmatprep.subr.mxu0 %v838
    %957 = vmatpush1.msra.mxu0 %v837
    %958 = vmatprep.subr.mxu0 %v842
    %959 = vmatpush1.msra.mxu0 %v841
    %960 = vmatprep.subr.mxu0 %v846
    %961 = vmatpush1.msra.mxu0 %v845
    %962 = vmatprep.subr.mxu0 %v850
    %963 = vmatpush1.msra.mxu0 %v849
    %964 = vmatprep.subr.mxu0 %v854
    %965 = vmatpush1.msra.mxu0 %v853
    %966 = vmatprep.subr.mxu0 %v858
    %967 = vmatpush1.msra.mxu0 %v857
    %968 = vmatprep.subr.mxu0 %v862
    %969 = vmatpush1.msra.mxu0 %v861
    %970 = vmatprep.subr.mxu0 %v866
    %971 = vmatpush1.msra.mxu0 %v865
    %972 = vmatprep.subr.mxu0 %v870
    %973 = vmatpush1.msra.mxu0 %v869
    %974 = vmatprep.subr.mxu0 0.0
    %975 = vmatpush1.msra.mxu0 0.0
    %976 = vmatprep.subr.mxu0 0.0
    %977 = vmatpush1.msra.mxu0 0.0
    %978 = vmatprep.subr.mxu0 0.0
    %979 = vmatpush1.msra.mxu0 0.0
    %980 = vmatprep.subr.mxu0 0.0
    %981 = vmatpush1.msra.mxu0 0.0
    %982 = vmatprep.subr.mxu0 0.0
    %983 = vmatpush1.msra.mxu0 0.0
    %984 = vmatprep.subr.mxu0 0.0
    %985 = vmatpush1.msra.mxu0 0.0
    %986 = vmatprep.subr.mxu0 0.0
    %987 = vmatpush1.msra.mxu0 0.0
    %988 = vmatprep.subr.mxu0 0.0
    %989 = vmatpush1.msra.mxu0 0.0
    %990 = vmatprep.subr.mxu0 0.0
    %991 = vmatpush1.msra.mxu0 0.0
    %992 = vmatprep.subr.mxu0 0.0
    %993 = vmatpush1.msra.mxu0 0.0
    %994 = vmatprep.subr.mxu0 0.0
    %995 = vmatpush1.msra.mxu0 0.0
    %996 = vmatprep.subr.mxu0 0.0
    %997 = vmatpush1.msra.mxu0 0.0
    %998 = vmatprep.subr.mxu0 0.0
    %999 = vmatpush1.msra.mxu0 0.0
    %1000 = vmatprep.subr.mxu0 0.0
    %1001 = vmatpush1.msra.mxu0 0.0
    %1002 = vmatprep.subr.mxu0 0.0
    %1003 = vmatpush1.msra.mxu0 0.0
    %1004 = vmatprep.subr.mxu0 0.0
    %1005 = vmatpush1.msra.mxu0 0.0
    %1006 = vmatprep.mubr.f32.mxu0 0.0
    %1007 = vmatmul.mubr.f32.gmra.mrb[0].mxu0 %v805
    %v1008 = vpop.f32.mrb[0].mxu0
    %v1009 = vadd.f32 0.0, %v1008
    %v1010 = vpop.f32.mrb[0].mxu0
    %v1011 = vadd.f32 0.0, %v1010
    %1012 = vdwg.mxu0
    %v1013 = vadd.f32 %v190, %v938
    %v1014 = vadd.f32 %v192, %v940
    %v1015 = vadd.f32 %v303, %v1009
    %v1016 = vadd.f32 %v305, %v1011
    %v1017 = vxor.u32 %v1013, 2147483648
    %v1018 = vmul.f32 %v1017, 1.442695
    %v1019 = vpow.pop %v1018
    %v1020 = vadd.f32 %v1019, 1.0
    %v1021 = vrcp.pop %v1020
    %v1022 = vmul.f32 1.0, %v1021
    %v1023 = vxor.u32 %v1014, 2147483648
    %v1024 = vmul.f32 %v1023, 1.442695
    %v1025 = vpow.pop %v1024
    %v1026 = vadd.f32 %v1025, 1.0
    %v1027 = vrcp.pop %v1026
    %v1028 = vmul.f32 1.0, %v1027
    %v1029 = vtanh.pop %v1015
    %v1030 = vxor.u32 %v1016, 2147483648
    %v1031 = vmul.f32 %v1030, 1.442695
    %v1032 = vpow.pop %v1031
    %v1033 = vadd.f32 %v1032, 1.0
    %v1034 = vrcp.pop %v1033
    %v1035 = vmul.f32 1.0, %v1034
    %v1036 = vmul.f32 %v1028, %v803
    %v1037 = vmul.f32 %v1022, %v1029
    %v1038 = vadd.f32 %v1036, %v1037
    %v1039 = vtanh.pop %v1038
    %v1040 = vmul.f32 %v1035, %v1039
    %1041 = vst [vmem:[#allocation2 + $0x10] sm:$0xff] %v1040
    %v1042 = vld [vmem:[#allocation3] sm:$0xff]
    %v1043 = vld [vmem:[#allocation3 + $0x8] sm:$0xff]
    %v1044 = vld [vmem:[#allocation3 + $0x10] sm:$0xff]
    %v1045 = vld [vmem:[#allocation3 + $0x18] sm:$0xff]
    %v1046 = vld [vmem:[#allocation3 + $0x20] sm:$0xff]
    %v1047 = vld [vmem:[#allocation3 + $0x28] sm:$0xff]
    %v1048 = vld [vmem:[#allocation3 + $0x30] sm:$0xff]
    %v1049 = vld [vmem:[#allocation3 + $0x38] sm:$0xff]
    %v1050 = vld [vmem:[#allocation3 + $0x40] sm:$0xff]
    %v1051 = vld [vmem:[#allocation3 + $0x48] sm:$0xff]
    %v1052 = vld [vmem:[#allocation3 + $0x50] sm:$0xff]
    %v1053 = vld [vmem:[#allocation3 + $0x58] sm:$0xff]
    %v1054 = vld [vmem:[#allocation3 + $0x60] sm:$0xff]
    %v1055 = vld [vmem:[#allocation3 + $0x68] sm:$0xff]
    %v1056 = vld [vmem:[#allocation3 + $0x70] sm:$0xff]
    %v1057 = vld [vmem:[#allocation3 + $0x78] sm:$0xff]
    %v1058 = vld [vmem:[#allocation3 + $0x80] sm:$0xff]
    %v1059 = vld [vmem:[#allocation3 + $0x88] sm:$0xff]
    %v1060 = vld [vmem:[#allocation3 + $0x90] sm:$0xff]
    %v1061 = vld [vmem:[#allocation3 + $0x98] sm:$0xff]
    %v1062 = vld [vmem:[#allocation3 + $0xa0] sm:$0xff]
    %v1063 = vld [vmem:[#allocation3 + $0xa8] sm:$0xff]
    %v1064 = vld [vmem:[#allocation3 + $0xb0] sm:$0xff]
    %v1065 = vld [vmem:[#allocation3 + $0xb8] sm:$0xff]
    %v1066 = vld [vmem:[#allocation3 + $0xc0] sm:$0xff]
    %v1067 = vld [vmem:[#allocation3 + $0xc8] sm:$0xff]
    %v1068 = vld [vmem:[#allocation3 + $0xd0] sm:$0xff]
    %v1069 = vld [vmem:[#allocation3 + $0xd8] sm:$0xff]
    %v1070 = vld [vmem:[#allocation3 + $0xe0] sm:$0xff]
    %v1071 = vld [vmem:[#allocation3 + $0xe8] sm:$0xff]
    %v1072 = vld [vmem:[#allocation3 + $0xf0] sm:$0xff]
    %v1073 = vld [vmem:[#allocation3 + $0xf8] sm:$0xff]
    %v1074 = vld [vmem:[#allocation3 + $0x100] sm:$0xff]
    %v1075 = vld [vmem:[#allocation3 + $0x108] sm:$0xff]
    %v1076 = vld [vmem:[#allocation3 + $0x110] sm:$0xff]
    %v1077 = vld [vmem:[#allocation3 + $0x118] sm:$0xff]
    %v1078 = vld [vmem:[#allocation3 + $0x120] sm:$0xff]
    %v1079 = vld [vmem:[#allocation3 + $0x128] sm:$0xff]
    %v1080 = vld [vmem:[#allocation3 + $0x130] sm:$0xff]
    %v1081 = vld [vmem:[#allocation3 + $0x138] sm:$0xff]
    %v1082 = vld [vmem:[#allocation3 + $0x140] sm:$0xff]
    %v1083 = vld [vmem:[#allocation3 + $0x148] sm:$0xff]
    %v1084 = vld [vmem:[#allocation3 + $0x150] sm:$0xff]
    %v1085 = vld [vmem:[#allocation3 + $0x158] sm:$0xff]
    %v1086 = vld [vmem:[#allocation3 + $0x160] sm:$0xff]
    %v1087 = vld [vmem:[#allocation3 + $0x168] sm:$0xff]
    %v1088 = vld [vmem:[#allocation3 + $0x170] sm:$0xff]
    %v1089 = vld [vmem:[#allocation3 + $0x178] sm:$0xff]
    %v1090 = vld [vmem:[#allocation3 + $0x180] sm:$0xff]
    %v1091 = vld [vmem:[#allocation3 + $0x188] sm:$0xff]
    %v1092 = vld [vmem:[#allocation3 + $0x190] sm:$0xff]
    %v1093 = vld [vmem:[#allocation3 + $0x198] sm:$0xff]
    %v1094 = vld [vmem:[#allocation3 + $0x1a0] sm:$0xff]
    %v1095 = vld [vmem:[#allocation3 + $0x1a8] sm:$0xff]
    %v1096 = vld [vmem:[#allocation3 + $0x1b0] sm:$0xff]
    %v1097 = vld [vmem:[#allocation3 + $0x1b8] sm:$0xff]
    %v1098 = vld [vmem:[#allocation3 + $0x1c0] sm:$0xff]
    %v1099 = vld [vmem:[#allocation3 + $0x1c8] sm:$0xff]
    %v1100 = vld [vmem:[#allocation3 + $0x1d0] sm:$0xff]
    %v1101 = vld [vmem:[#allocation3 + $0x1d8] sm:$0xff]
    %v1102 = vld [vmem:[#allocation3 + $0x1e0] sm:$0xff]
    %v1103 = vld [vmem:[#allocation3 + $0x1e8] sm:$0xff]
    %v1104 = vld [vmem:[#allocation3 + $0x1f0] sm:$0xff]
    %v1105 = vld [vmem:[#allocation3 + $0x1f8] sm:$0xff]
    %1106 = vmatprep.subr.mxu0 %v1043
    %1107 = vmatpush1.msra.mxu0 %v1042
    %1108 = vmatprep.subr.mxu0 %v1047
    %1109 = vmatpush1.msra.mxu0 %v1046
    %1110 = vmatprep.subr.mxu0 %v1051
    %1111 = vmatpush1.msra.mxu0 %v1050
    %1112 = vmatprep.subr.mxu0 %v1055
    %1113 = vmatpush1.msra.mxu0 %v1054
    %1114 = vmatprep.subr.mxu0 %v1059
    %1115 = vmatpush1.msra.mxu0 %v1058
    %1116 = vmatprep.subr.mxu0 %v1063
    %1117 = vmatpush1.msra.mxu0 %v1062
    %1118 = vmatprep.subr.mxu0 %v1067
    %1119 = vmatpush1.msra.mxu0 %v1066
    %1120 = vmatprep.subr.mxu0 %v1071
    %1121 = vmatpush1.msra.mxu0 %v1070
    %1122 = vmatprep.subr.mxu0 %v1075
    %1123 = vmatpush1.msra.mxu0 %v1074
    %1124 = vmatprep.subr.mxu0 %v1079
    %1125 = vmatpush1.msra.mxu0 %v1078
    %1126 = vmatprep.subr.mxu0 %v1083
    %1127 = vmatpush1.msra.mxu0 %v1082
    %1128 = vmatprep.subr.mxu0 %v1087
    %1129 = vmatpush1.msra.mxu0 %v1086
    %1130 = vmatprep.subr.mxu0 %v1091
    %1131 = vmatpush1.msra.mxu0 %v1090
    %1132 = vmatprep.subr.mxu0 %v1095
    %1133 = vmatpush1.msra.mxu0 %v1094
    %1134 = vmatprep.subr.mxu0 %v1099
    %1135 = vmatpush1.msra.mxu0 %v1098
    %1136 = vmatprep.subr.mxu0 %v1103
    %1137 = vmatpush1.msra.mxu0 %v1102
    %1138 = vmatprep.subr.mxu0 0.0
    %1139 = vmatpush1.msra.mxu0 0.0
    %1140 = vmatprep.subr.mxu0 0.0
    %1141 = vmatpush1.msra.mxu0 0.0
    %1142 = vmatprep.subr.mxu0 0.0
    %1143 = vmatpush1.msra.mxu0 0.0
    %1144 = vmatprep.subr.mxu0 0.0
    %1145 = vmatpush1.msra.mxu0 0.0
    %1146 = vmatprep.subr.mxu0 0.0
    %1147 = vmatpush1.msra.mxu0 0.0
    %1148 = vmatprep.subr.mxu0 0.0
    %1149 = vmatpush1.msra.mxu0 0.0
    %1150 = vmatprep.subr.mxu0 0.0
    %1151 = vmatpush1.msra.mxu0 0.0
    %1152 = vmatprep.subr.mxu0 0.0
    %1153 = vmatpush1.msra.mxu0 0.0
    %1154 = vmatprep.subr.mxu0 0.0
    %1155 = vmatpush1.msra.mxu0 0.0
    %1156 = vmatprep.subr.mxu0 0.0
    %1157 = vmatpush1.msra.mxu0 0.0
    %1158 = vmatprep.subr.mxu0 0.0
    %1159 = vmatpush1.msra.mxu0 0.0
    %1160 = vmatprep.subr.mxu0 0.0
    %1161 = vmatpush1.msra.mxu0 0.0
    %1162 = vmatprep.subr.mxu0 0.0
    %1163 = vmatpush1.msra.mxu0 0.0
    %1164 = vmatprep.subr.mxu0 0.0
    %1165 = vmatpush1.msra.mxu0 0.0
    %1166 = vmatprep.subr.mxu0 0.0
    %1167 = vmatpush1.msra.mxu0 0.0
    %1168 = vmatprep.subr.mxu0 0.0
    %1169 = vmatpush1.msra.mxu0 0.0
    %1170 = vmatprep.mubr.f32.mxu0 0.0
    %1171 = vmatmul.mubr.f32.gmra.mrb[0].mxu0 %v1040
    %v1172 = vpop.f32.mrb[0].mxu0
    %v1173 = vadd.f32 0.0, %v1172
    %v1174 = vpop.f32.mrb[0].mxu0
    %v1175 = vadd.f32 0.0, %v1174
    %1176 = vdwg.mxu0
    %1177 = vmatprep.subr.mxu0 %v1045
    %1178 = vmatpush1.msra.mxu0 %v1044
    %1179 = vmatprep.subr.mxu0 %v1049
    %1180 = vmatpush1.msra.mxu0 %v1048
    %1181 = vmatprep.subr.mxu0 %v1053
    %1182 = vmatpush1.msra.mxu0 %v1052
    %1183 = vmatprep.subr.mxu0 %v1057
    %1184 = vmatpush1.msra.mxu0 %v1056
    %1185 = vmatprep.subr.mxu0 %v1061
    %1186 = vmatpush1.msra.mxu0 %v1060
    %1187 = vmatprep.subr.mxu0 %v1065
    %1188 = vmatpush1.msra.mxu0 %v1064
    %1189 = vmatprep.subr.mxu0 %v1069
    %1190 = vmatpush1.msra.mxu0 %v1068
    %1191 = vmatprep.subr.mxu0 %v1073
    %1192 = vmatpush1.msra.mxu0 %v1072
    %1193 = vmatprep.subr.mxu0 %v1077
    %1194 = vmatpush1.msra.mxu0 %v1076
    %1195 = vmatprep.subr.mxu0 %v1081
    %1196 = vmatpush1.msra.mxu0 %v1080
    %1197 = vmatprep.subr.mxu0 %v1085
    %1198 = vmatpush1.msra.mxu0 %v1084
    %1199 = vmatprep.subr.mxu0 %v1089
    %1200 = vmatpush1.msra.mxu0 %v1088
    %1201 = vmatprep.subr.mxu0 %v1093
    %1202 = vmatpush1.msra.mxu0 %v1092
    %1203 = vmatprep.subr.mxu0 %v1097
    %1204 = vmatpush1.msra.mxu0 %v1096
    %1205 = vmatprep.subr.mxu0 %v1101
    %1206 = vmatpush1.msra.mxu0 %v1100
    %1207 = vmatprep.subr.mxu0 %v1105
    %1208 = vmatpush1.msra.mxu0 %v1104
    %1209 = vmatprep.subr.mxu0 0.0
    %1210 = vmatpush1.msra.mxu0 0.0
    %1211 = vmatprep.subr.mxu0 0.0
    %1212 = vmatpush1.msra.mxu0 0.0
    %1213 = vmatprep.subr.mxu0 0.0
    %1214 = vmatpush1.msra.mxu0 0.0
    %1215 = vmatprep.subr.mxu0 0.0
    %1216 = vmatpush1.msra.mxu0 0.0
    %1217 = vmatprep.subr.mxu0 0.0
    %1218 = vmatpush1.msra.mxu0 0.0
    %1219 = vmatprep.subr.mxu0 0.0
    %1220 = vmatpush1.msra.mxu0 0.0
    %1221 = vmatprep.subr.mxu0 0.0
    %1222 = vmatpush1.msra.mxu0 0.0
    %1223 = vmatprep.subr.mxu0 0.0
    %1224 = vmatpush1.msra.mxu0 0.0
    %1225 = vmatprep.subr.mxu0 0.0
    %1226 = vmatpush1.msra.mxu0 0.0
    %1227 = vmatprep.subr.mxu0 0.0
    %1228 = vmatpush1.msra.mxu0 0.0
    %1229 = vmatprep.subr.mxu0 0.0
    %1230 = vmatpush1.msra.mxu0 0.0
    %1231 = vmatprep.subr.mxu0 0.0
    %1232 = vmatpush1.msra.mxu0 0.0
    %1233 = vmatprep.subr.mxu0 0.0
    %1234 = vmatpush1.msra.mxu0 0.0
    %1235 = vmatprep.subr.mxu0 0.0
    %1236 = vmatpush1.msra.mxu0 0.0
    %1237 = vmatprep.subr.mxu0 0.0
    %1238 = vmatpush1.msra.mxu0 0.0
    %1239 = vmatprep.subr.mxu0 0.0
    %1240 = vmatpush1.msra.mxu0 0.0
    %1241 = vmatprep.mubr.f32.mxu0 0.0
    %1242 = vmatmul.mubr.f32.gmra.mrb[0].mxu0 %v1040
    %v1243 = vpop.f32.mrb[0].mxu0
    %v1244 = vadd.f32 0.0, %v1243
    %v1245 = vpop.f32.mrb[0].mxu0
    %v1246 = vadd.f32 0.0, %v1245
    %1247 = vdwg.mxu0
    %v1248 = vadd.f32 %v196, %v1173
    %v1249 = vadd.f32 %v198, %v1175
    %v1250 = vadd.f32 %v309, %v1244
    %v1251 = vadd.f32 %v311, %v1246
    %v1252 = vxor.u32 %v1248, 2147483648
    %v1253 = vmul.f32 %v1252, 1.442695
    %v1254 = vpow.pop %v1253
    %v1255 = vadd.f32 %v1254, 1.0
    %v1256 = vrcp.pop %v1255
    %v1257 = vmul.f32 1.0, %v1256
    %v1258 = vxor.u32 %v1249, 2147483648
    %v1259 = vmul.f32 %v1258, 1.442695
    %v1260 = vpow.pop %v1259
    %v1261 = vadd.f32 %v1260, 1.0
    %v1262 = vrcp.pop %v1261
    %v1263 = vmul.f32 1.0, %v1262
    %v1264 = vtanh.pop %v1250
    %v1265 = vxor.u32 %v1251, 2147483648
    %v1266 = vmul.f32 %v1265, 1.442695
    %v1267 = vpow.pop %v1266
    %v1268 = vadd.f32 %v1267, 1.0
    %v1269 = vrcp.pop %v1268
    %v1270 = vmul.f32 1.0, %v1269
    %v1271 = vmul.f32 %v1263, %v1038
    %v1272 = vmul.f32 %v1257, %v1264
    %v1273 = vadd.f32 %v1271, %v1272
    %v1274 = vtanh.pop %v1273
    %v1275 = vmul.f32 %v1270, %v1274
    %1276 = vst [vmem:[#allocation2 + $0x18] sm:$0xff] %v1275
    %v1277 = vld [vmem:[#allocation3] sm:$0xff]
    %v1278 = vld [vmem:[#allocation3 + $0x8] sm:$0xff]
    %v1279 = vld [vmem:[#allocation3 + $0x10] sm:$0xff]
    %v1280 = vld [vmem:[#allocation3 + $0x18] sm:$0xff]
    %v1281 = vld [vmem:[#allocation3 + $0x20] sm:$0xff]
    %v1282 = vld [vmem:[#allocation3 + $0x28] sm:$0xff]
    %v1283 = vld [vmem:[#allocation3 + $0x30] sm:$0xff]
    %v1284 = vld [vmem:[#allocation3 + $0x38] sm:$0xff]
    %v1285 = vld [vmem:[#allocation3 + $0x40] sm:$0xff]
    %v1286 = vld [vmem:[#allocation3 + $0x48] sm:$0xff]
    %v1287 = vld [vmem:[#allocation3 + $0x50] sm:$0xff]
    %v1288 = vld [vmem:[#allocation3 + $0x58] sm:$0xff]
    %v1289 = vld [vmem:[#allocation3 + $0x60] sm:$0xff]
    %v1290 = vld [vmem:[#allocation3 + $0x68] sm:$0xff]
    %v1291 = vld [vmem:[#allocation3 + $0x70] sm:$0xff]
    %v1292 = vld [vmem:[#allocation3 + $0x78] sm:$0xff]
    %v1293 = vld [vmem:[#allocation3 + $0x80] sm:$0xff]
    %v1294 = vld [vmem:[#allocation3 + $0x88] sm:$0xff]
    %v1295 = vld [vmem:[#allocation3 + $0x90] sm:$0xff]
    %v1296 = vld [vmem:[#allocation3 + $0x98] sm:$0xff]
    %v1297 = vld [vmem:[#allocation3 + $0xa0] sm:$0xff]
    %v1298 = vld [vmem:[#allocation3 + $0xa8] sm:$0xff]
    %v1299 = vld [vmem:[#allocation3 + $0xb0] sm:$0xff]
    %v1300 = vld [vmem:[#allocation3 + $0xb8] sm:$0xff]
    %v1301 = vld [vmem:[#allocation3 + $0xc0] sm:$0xff]
    %v1302 = vld [vmem:[#allocation3 + $0xc8] sm:$0xff]
    %v1303 = vld [vmem:[#allocation3 + $0xd0] sm:$0xff]
    %v1304 = vld [vmem:[#allocation3 + $0xd8] sm:$0xff]
    %v1305 = vld [vmem:[#allocation3 + $0xe0] sm:$0xff]
    %v1306 = vld [vmem:[#allocation3 + $0xe8] sm:$0xff]
    %v1307 = vld [vmem:[#allocation3 + $0xf0] sm:$0xff]
    %v1308 = vld [vmem:[#allocation3 + $0xf8] sm:$0xff]
    %v1309 = vld [vmem:[#allocation3 + $0x100] sm:$0xff]
    %v1310 = vld [vmem:[#allocation3 + $0x108] sm:$0xff]
    %v1311 = vld [vmem:[#allocation3 + $0x110] sm:$0xff]
    %v1312 = vld [vmem:[#allocation3 + $0x118] sm:$0xff]
    %v1313 = vld [vmem:[#allocation3 + $0x120] sm:$0xff]
    %v1314 = vld [vmem:[#allocation3 + $0x128] sm:$0xff]
    %v1315 = vld [vmem:[#allocation3 + $0x130] sm:$0xff]
    %v1316 = vld [vmem:[#allocation3 + $0x138] sm:$0xff]
    %v1317 = vld [vmem:[#allocation3 + $0x140] sm:$0xff]
    %v1318 = vld [vmem:[#allocation3 + $0x148] sm:$0xff]
    %v1319 = vld [vmem:[#allocation3 + $0x150] sm:$0xff]
    %v1320 = vld [vmem:[#allocation3 + $0x158] sm:$0xff]
    %v1321 = vld [vmem:[#allocation3 + $0x160] sm:$0xff]
    %v1322 = vld [vmem:[#allocation3 + $0x168] sm:$0xff]
    %v1323 = vld [vmem:[#allocation3 + $0x170] sm:$0xff]
    %v1324 = vld [vmem:[#allocation3 + $0x178] sm:$0xff]
    %v1325 = vld [vmem:[#allocation3 + $0x180] sm:$0xff]
    %v1326 = vld [vmem:[#allocation3 + $0x188] sm:$0xff]
    %v1327 = vld [vmem:[#allocation3 + $0x190] sm:$0xff]
    %v1328 = vld [vmem:[#allocation3 + $0x198] sm:$0xff]
    %v1329 = vld [vmem:[#allocation3 + $0x1a0] sm:$0xff]
    %v1330 = vld [vmem:[#allocation3 + $0x1a8] sm:$0xff]
    %v1331 = vld [vmem:[#allocation3 + $0x1b0] sm:$0xff]
    %v1332 = vld [vmem:[#allocation3 + $0x1b8] sm:$0xff]
    %v1333 = vld [vmem:[#allocation3 + $0x1c0] sm:$0xff]
    %v1334 = vld [vmem:[#allocation3 + $0x1c8] sm:$0xff]
    %v1335 = vld [vmem:[#allocation3 + $0x1d0] sm:$0xff]
    %v1336 = vld [vmem:[#allocation3 + $0x1d8] sm:$0xff]
    %v1337 = vld [vmem:[#allocation3 + $0x1e0] sm:$0xff]
    %v1338 = vld [vmem:[#allocation3 + $0x1e8] sm:$0xff]
    %v1339 = vld [vmem:[#allocation3 + $0x1f0] sm:$0xff]
    %v1340 = vld [vmem:[#allocation3 + $0x1f8] sm:$0xff]
    %1341 = vmatprep.subr.mxu0 %v1278
    %1342 = vmatpush1.msra.mxu0 %v1277
    %1343 = vmatprep.subr.mxu0 %v1282
    %1344 = vmatpush1.msra.mxu0 %v1281
    %1345 = vmatprep.subr.mxu0 %v1286
    %1346 = vmatpush1.msra.mxu0 %v1285
    %1347 = vmatprep.subr.mxu0 %v1290
    %1348 = vmatpush1.msra.mxu0 %v1289
    %1349 = vmatprep.subr.mxu0 %v1294
    %1350 = vmatpush1.msra.mxu0 %v1293
    %1351 = vmatprep.subr.mxu0 %v1298
    %1352 = vmatpush1.msra.mxu0 %v1297
    %1353 = vmatprep.subr.mxu0 %v1302
    %1354 = vmatpush1.msra.mxu0 %v1301
    %1355 = vmatprep.subr.mxu0 %v1306
    %1356 = vmatpush1.msra.mxu0 %v1305
    %1357 = vmatprep.subr.mxu0 %v1310
    %1358 = vmatpush1.msra.mxu0 %v1309
    %1359 = vmatprep.subr.mxu0 %v1314
    %1360 = vmatpush1.msra.mxu0 %v1313
    %1361 = vmatprep.subr.mxu0 %v1318
    %1362 = vmatpush1.msra.mxu0 %v1317
    %1363 = vmatprep.subr.mxu0 %v1322
    %1364 = vmatpush1.msra.mxu0 %v1321
    %1365 = vmatprep.subr.mxu0 %v1326
    %1366 = vmatpush1.msra.mxu0 %v1325
    %1367 = vmatprep.subr.mxu0 %v1330
    %1368 = vmatpush1.msra.mxu0 %v1329
    %1369 = vmatprep.subr.mxu0 %v1334
    %1370 = vmatpush1.msra.mxu0 %v1333
    %1371 = vmatprep.subr.mxu0 %v1338
    %1372 = vmatpush1.msra.mxu0 %v1337
    %1373 = vmatprep.subr.mxu0 0.0
    %1374 = vmatpush1.msra.mxu0 0.0
    %1375 = vmatprep.subr.mxu0 0.0
    %1376 = vmatpush1.msra.mxu0 0.0
    %1377 = vmatprep.subr.mxu0 0.0
    %1378 = vmatpush1.msra.mxu0 0.0
    %1379 = vmatprep.subr.mxu0 0.0
    %1380 = vmatpush1.msra.mxu0 0.0
    %1381 = vmatprep.subr.mxu0 0.0
    %1382 = vmatpush1.msra.mxu0 0.0
    %1383 = vmatprep.subr.mxu0 0.0
    %1384 = vmatpush1.msra.mxu0 0.0
    %1385 = vmatprep.subr.mxu0 0.0
    %1386 = vmatpush1.msra.mxu0 0.0
    %1387 = vmatprep.subr.mxu0 0.0
    %1388 = vmatpush1.msra.mxu0 0.0
    %1389 = vmatprep.subr.mxu0 0.0
    %1390 = vmatpush1.msra.mxu0 0.0
    %1391 = vmatprep.subr.mxu0 0.0
    %1392 = vmatpush1.msra.mxu0 0.0
    %1393 = vmatprep.subr.mxu0 0.0
    %1394 = vmatpush1.msra.mxu0 0.0
    %1395 = vmatprep.subr.mxu0 0.0
    %1396 = vmatpush1.msra.mxu0 0.0
    %1397 = vmatprep.subr.mxu0 0.0
    %1398 = vmatpush1.msra.mxu0 0.0
    %1399 = vmatprep.subr.mxu0 0.0
    %1400 = vmatpush1.msra.mxu0 0.0
    %1401 = vmatprep.subr.mxu0 0.0
    %1402 = vmatpush1.msra.mxu0 0.0
    %1403 = vmatprep.subr.mxu0 0.0
    %1404 = vmatpush1.msra.mxu0 0.0
    %1405 = vmatprep.mubr.f32.mxu0 0.0
    %1406 = vmatmul.mubr.f32.gmra.mrb[0].mxu0 %v1275
    %v1407 = vpop.f32.mrb[0].mxu0
    %v1408 = vadd.f32 0.0, %v1407
    %v1409 = vpop.f32.mrb[0].mxu0
    %v1410 = vadd.f32 0.0, %v1409
    %1411 = vdwg.mxu0
    %1412 = vmatprep.subr.mxu0 %v1280
    %1413 = vmatpush1.msra.mxu0 %v1279
    %1414 = vmatprep.subr.mxu0 %v1284
    %1415 = vmatpush1.msra.mxu0 %v1283
    %1416 = vmatprep.subr.mxu0 %v1288
    %1417 = vmatpush1.msra.mxu0 %v1287
    %1418 = vmatprep.subr.mxu0 %v1292
    %1419 = vmatpush1.msra.mxu0 %v1291
    %1420 = vmatprep.subr.mxu0 %v1296
    %1421 = vmatpush1.msra.mxu0 %v1295
    %1422 = vmatprep.subr.mxu0 %v1300
    %1423 = vmatpush1.msra.mxu0 %v1299
    %1424 = vmatprep.subr.mxu0 %v1304
    %1425 = vmatpush1.msra.mxu0 %v1303
    %1426 = vmatprep.subr.mxu0 %v1308
    %1427 = vmatpush1.msra.mxu0 %v1307
    %1428 = vmatprep.subr.mxu0 %v1312
    %1429 = vmatpush1.msra.mxu0 %v1311
    %1430 = vmatprep.subr.mxu0 %v1316
    %1431 = vmatpush1.msra.mxu0 %v1315
    %1432 = vmatprep.subr.mxu0 %v1320
    %1433 = vmatpush1.msra.mxu0 %v1319
    %1434 = vmatprep.subr.mxu0 %v1324
    %1435 = vmatpush1.msra.mxu0 %v1323
    %1436 = vmatprep.subr.mxu0 %v1328
    %1437 = vmatpush1.msra.mxu0 %v1327
    %1438 = vmatprep.subr.mxu0 %v1332
    %1439 = vmatpush1.msra.mxu0 %v1331
    %1440 = vmatprep.subr.mxu0 %v1336
    %1441 = vmatpush1.msra.mxu0 %v1335
    %1442 = vmatprep.subr.mxu0 %v1340
    %1443 = vmatpush1.msra.mxu0 %v1339
    %1444 = vmatprep.subr.mxu0 0.0
    %1445 = vmatpush1.msra.mxu0 0.0
    %1446 = vmatprep.subr.mxu0 0.0
    %1447 = vmatpush1.msra.mxu0 0.0
    %1448 = vmatprep.subr.mxu0 0.0
    %1449 = vmatpush1.msra.mxu0 0.0
    %1450 = vmatprep.subr.mxu0 0.0
    %1451 = vmatpush1.msra.mxu0 0.0
    %1452 = vmatprep.subr.mxu0 0.0
    %1453 = vmatpush1.msra.mxu0 0.0
    %1454 = vmatprep.subr.mxu0 0.0
    %1455 = vmatpush1.msra.mxu0 0.0
    %1456 = vmatprep.subr.mxu0 0.0
    %1457 = vmatpush1.msra.mxu0 0.0
    %1458 = vmatprep.subr.mxu0 0.0
    %1459 = vmatpush1.msra.mxu0 0.0
    %1460 = vmatprep.subr.mxu0 0.0
    %1461 = vmatpush1.msra.mxu0 0.0
    %1462 = vmatprep.subr.mxu0 0.0
    %1463 = vmatpush1.msra.mxu0 0.0
    %1464 = vmatprep.subr.mxu0 0.0
    %1465 = vmatpush1.msra.mxu0 0.0
    %1466 = vmatprep.subr.mxu0 0.0
    %1467 = vmatpush1.msra.mxu0 0.0
    %1468 = vmatprep.subr.mxu0 0.0
    %1469 = vmatpush1.msra.mxu0 0.0
    %1470 = vmatprep.subr.mxu0 0.0
    %1471 = vmatpush1.msra.mxu0 0.0
    %1472 = vmatprep.subr.mxu0 0.0
    %1473 = vmatpush1.msra.mxu0 0.0
    %1474 = vmatprep.subr.mxu0 0.0
    %1475 = vmatpush1.msra.mxu0 0.0
    %1476 = vmatprep.mubr.f32.mxu0 0.0
    %1477 = vmatmul.mubr.f32.gmra.mrb[0].mxu0 %v1275
    %v1478 = vpop.f32.mrb[0].mxu0
    %v1479 = vadd.f32 0.0, %v1478
    %v1480 = vpop.f32.mrb[0].mxu0
    %v1481 = vadd.f32 0.0, %v1480
    %1482 = vdwg.mxu0
    %v1483 = vadd.f32 %v202, %v1408
    %v1484 = vadd.f32 %v204, %v1410
    %v1485 = vadd.f32 %v315, %v1479
    %v1486 = vadd.f32 %v317, %v1481
    %v1487 = vxor.u32 %v1483, 2147483648
    %v1488 = vmul.f32 %v1487, 1.442695
    %v1489 = vpow.pop %v1488
    %v1490 = vadd.f32 %v1489, 1.0
    %v1491 = vrcp.pop %v1490
    %v1492 = vmul.f32 1.0, %v1491
    %v1493 = vxor.u32 %v1484, 2147483648
    %v1494 = vmul.f32 %v1493, 1.442695
    %v1495 = vpow.pop %v1494
    %v1496 = vadd.f32 %v1495, 1.0
    %v1497 = vrcp.pop %v1496
    %v1498 = vmul.f32 1.0, %v1497
    %v1499 = vtanh.pop %v1485
    %v1500 = vxor.u32 %v1486, 2147483648
    %v1501 = vmul.f32 %v1500, 1.442695
    %v1502 = vpow.pop %v1501
    %v1503 = vadd.f32 %v1502, 1.0
    %v1504 = vrcp.pop %v1503
    %v1505 = vmul.f32 1.0, %v1504
    %v1506 = vmul.f32 %v1498, %v1273
    %v1507 = vmul.f32 %v1492, %v1499
    %v1508 = vadd.f32 %v1506, %v1507
    %v1509 = vtanh.pop %v1508
    %v1510 = vmul.f32 %v1505, %v1509
    %1511 = vst [vmem:[#allocation2 + $0x20] sm:$0xff] %v1510
    %v1512 = vld [vmem:[#allocation3] sm:$0xff]
    %v1513 = vld [vmem:[#allocation3 + $0x8] sm:$0xff]
    %v1514 = vld [vmem:[#allocation3 + $0x10] sm:$0xff]
    %v1515 = vld [vmem:[#allocation3 + $0x18] sm:$0xff]
    %v1516 = vld [vmem:[#allocation3 + $0x20] sm:$0xff]
    %v1517 = vld [vmem:[#allocation3 + $0x28] sm:$0xff]
    %v1518 = vld [vmem:[#allocation3 + $0x30] sm:$0xff]
    %v1519 = vld [vmem:[#allocation3 + $0x38] sm:$0xff]
    %v1520 = vld [vmem:[#allocation3 + $0x40] sm:$0xff]
    %v1521 = vld [vmem:[#allocation3 + $0x48] sm:$0xff]
    %v1522 = vld [vmem:[#allocation3 + $0x50] sm:$0xff]
    %v1523 = vld [vmem:[#allocation3 + $0x58] sm:$0xff]
    %v1524 = vld [vmem:[#allocation3 + $0x60] sm:$0xff]
    %v1525 = vld [vmem:[#allocation3 + $0x68] sm:$0xff]
    %v1526 = vld [vmem:[#allocation3 + $0x70] sm:$0xff]
    %v1527 = vld [vmem:[#allocation3 + $0x78] sm:$0xff]
    %v1528 = vld [vmem:[#allocation3 + $0x80] sm:$0xff]
    %v1529 = vld [vmem:[#allocation3 + $0x88] sm:$0xff]
    %v1530 = vld [vmem:[#allocation3 + $0x90] sm:$0xff]
    %v1531 = vld [vmem:[#allocation3 + $0x98] sm:$0xff]
    %v1532 = vld [vmem:[#allocation3 + $0xa0] sm:$0xff]
    %v1533 = vld [vmem:[#allocation3 + $0xa8] sm:$0xff]
    %v1534 = vld [vmem:[#allocation3 + $0xb0] sm:$0xff]
    %v1535 = vld [vmem:[#allocation3 + $0xb8] sm:$0xff]
    %v1536 = vld [vmem:[#allocation3 + $0xc0] sm:$0xff]
    %v1537 = vld [vmem:[#allocation3 + $0xc8] sm:$0xff]
    %v1538 = vld [vmem:[#allocation3 + $0xd0] sm:$0xff]
    %v1539 = vld [vmem:[#allocation3 + $0xd8] sm:$0xff]
    %v1540 = vld [vmem:[#allocation3 + $0xe0] sm:$0xff]
    %v1541 = vld [vmem:[#allocation3 + $0xe8] sm:$0xff]
    %v1542 = vld [vmem:[#allocation3 + $0xf0] sm:$0xff]
    %v1543 = vld [vmem:[#allocation3 + $0xf8] sm:$0xff]
    %v1544 = vld [vmem:[#allocation3 + $0x100] sm:$0xff]
    %v1545 = vld [vmem:[#allocation3 + $0x108] sm:$0xff]
    %v1546 = vld [vmem:[#allocation3 + $0x110] sm:$0xff]
    %v1547 = vld [vmem:[#allocation3 + $0x118] sm:$0xff]
    %v1548 = vld [vmem:[#allocation3 + $0x120] sm:$0xff]
    %v1549 = vld [vmem:[#allocation3 + $0x128] sm:$0xff]
    %v1550 = vld [vmem:[#allocation3 + $0x130] sm:$0xff]
    %v1551 = vld [vmem:[#allocation3 + $0x138] sm:$0xff]
    %v1552 = vld [vmem:[#allocation3 + $0x140] sm:$0xff]
    %v1553 = vld [vmem:[#allocation3 + $0x148] sm:$0xff]
    %v1554 = vld [vmem:[#allocation3 + $0x150] sm:$0xff]
    %v1555 = vld [vmem:[#allocation3 + $0x158] sm:$0xff]
    %v1556 = vld [vmem:[#allocation3 + $0x160] sm:$0xff]
    %v1557 = vld [vmem:[#allocation3 + $0x168] sm:$0xff]
    %v1558 = vld [vmem:[#allocation3 + $0x170] sm:$0xff]
    %v1559 = vld [vmem:[#allocation3 + $0x178] sm:$0xff]
    %v1560 = vld [vmem:[#allocation3 + $0x180] sm:$0xff]
    %v1561 = vld [vmem:[#allocation3 + $0x188] sm:$0xff]
    %v1562 = vld [vmem:[#allocation3 + $0x190] sm:$0xff]
    %v1563 = vld [vmem:[#allocation3 + $0x198] sm:$0xff]
    %v1564 = vld [vmem:[#allocation3 + $0x1a0] sm:$0xff]
    %v1565 = vld [vmem:[#allocation3 + $0x1a8] sm:$0xff]
    %v1566 = vld [vmem:[#allocation3 + $0x1b0] sm:$0xff]
    %v1567 = vld [vmem:[#allocation3 + $0x1b8] sm:$0xff]
    %v1568 = vld [vmem:[#allocation3 + $0x1c0] sm:$0xff]
    %v1569 = vld [vmem:[#allocation3 + $0x1c8] sm:$0xff]
    %v1570 = vld [vmem:[#allocation3 + $0x1d0] sm:$0xff]
    %v1571 = vld [vmem:[#allocation3 + $0x1d8] sm:$0xff]
    %v1572 = vld [vmem:[#allocation3 + $0x1e0] sm:$0xff]
    %v1573 = vld [vmem:[#allocation3 + $0x1e8] sm:$0xff]
    %v1574 = vld [vmem:[#allocation3 + $0x1f0] sm:$0xff]
    %v1575 = vld [vmem:[#allocation3 + $0x1f8] sm:$0xff]
    %1576 = vmatprep.subr.mxu0 %v1513
    %1577 = vmatpush1.msra.mxu0 %v1512
    %1578 = vmatprep.subr.mxu0 %v1517
    %1579 = vmatpush1.msra.mxu0 %v1516
    %1580 = vmatprep.subr.mxu0 %v1521
    %1581 = vmatpush1.msra.mxu0 %v1520
    %1582 = vmatprep.subr.mxu0 %v1525
    %1583 = vmatpush1.msra.mxu0 %v1524
    %1584 = vmatprep.subr.mxu0 %v1529
    %1585 = vmatpush1.msra.mxu0 %v1528
    %1586 = vmatprep.subr.mxu0 %v1533
    %1587 = vmatpush1.msra.mxu0 %v1532
    %1588 = vmatprep.subr.mxu0 %v1537
    %1589 = vmatpush1.msra.mxu0 %v1536
    %1590 = vmatprep.subr.mxu0 %v1541
    %1591 = vmatpush1.msra.mxu0 %v1540
    %1592 = vmatprep.subr.mxu0 %v1545
    %1593 = vmatpush1.msra.mxu0 %v1544
    %1594 = vmatprep.subr.mxu0 %v1549
    %1595 = vmatpush1.msra.mxu0 %v1548
    %1596 = vmatprep.subr.mxu0 %v1553
    %1597 = vmatpush1.msra.mxu0 %v1552
    %1598 = vmatprep.subr.mxu0 %v1557
    %1599 = vmatpush1.msra.mxu0 %v1556
    %1600 = vmatprep.subr.mxu0 %v1561
    %1601 = vmatpush1.msra.mxu0 %v1560
    %1602 = vmatprep.subr.mxu0 %v1565
    %1603 = vmatpush1.msra.mxu0 %v1564
    %1604 = vmatprep.subr.mxu0 %v1569
    %1605 = vmatpush1.msra.mxu0 %v1568
    %1606 = vmatprep.subr.mxu0 %v1573
    %1607 = vmatpush1.msra.mxu0 %v1572
    %1608 = vmatprep.subr.mxu0 0.0
    %1609 = vmatpush1.msra.mxu0 0.0
    %1610 = vmatprep.subr.mxu0 0.0
    %1611 = vmatpush1.msra.mxu0 0.0
    %1612 = vmatprep.subr.mxu0 0.0
    %1613 = vmatpush1.msra.mxu0 0.0
    %1614 = vmatprep.subr.mxu0 0.0
    %1615 = vmatpush1.msra.mxu0 0.0
    %1616 = vmatprep.subr.mxu0 0.0
    %1617 = vmatpush1.msra.mxu0 0.0
    %1618 = vmatprep.subr.mxu0 0.0
    %1619 = vmatpush1.msra.mxu0 0.0
    %1620 = vmatprep.subr.mxu0 0.0
    %1621 = vmatpush1.msra.mxu0 0.0
    %1622 = vmatprep.subr.mxu0 0.0
    %1623 = vmatpush1.msra.mxu0 0.0
    %1624 = vmatprep.subr.mxu0 0.0
    %1625 = vmatpush1.msra.mxu0 0.0
    %1626 = vmatprep.subr.mxu0 0.0
    %1627 = vmatpush1.msra.mxu0 0.0
    %1628 = vmatprep.subr.mxu0 0.0
    %1629 = vmatpush1.msra.mxu0 0.0
    %1630 = vmatprep.subr.mxu0 0.0
    %1631 = vmatpush1.msra.mxu0 0.0
    %1632 = vmatprep.subr.mxu0 0.0
    %1633 = vmatpush1.msra.mxu0 0.0
    %1634 = vmatprep.subr.mxu0 0.0
    %1635 = vmatpush1.msra.mxu0 0.0
    %1636 = vmatprep.subr.mxu0 0.0
    %1637 = vmatpush1.msra.mxu0 0.0
    %1638 = vmatprep.subr.mxu0 0.0
    %1639 = vmatpush1.msra.mxu0 0.0
    %1640 = vmatprep.mubr.f32.mxu0 0.0
    %1641 = vmatmul.mubr.f32.gmra.mrb[0].mxu0 %v1510
    %v1642 = vpop.f32.mrb[0].mxu0
    %v1643 = vadd.f32 0.0, %v1642
    %v1644 = vpop.f32.mrb[0].mxu0
    %v1645 = vadd.f32 0.0, %v1644
    %1646 = vdwg.mxu0
    %1647 = vmatprep.subr.mxu0 %v1515
    %1648 = vmatpush1.msra.mxu0 %v1514
    %1649 = vmatprep.subr.mxu0 %v1519
    %1650 = vmatpush1.msra.mxu0 %v1518
    %1651 = vmatprep.subr.mxu0 %v1523
    %1652 = vmatpush1.msra.mxu0 %v1522
    %1653 = vmatprep.subr.mxu0 %v1527
    %1654 = vmatpush1.msra.mxu0 %v1526
    %1655 = vmatprep.subr.mxu0 %v1531
    %1656 = vmatpush1.msra.mxu0 %v1530
    %1657 = vmatprep.subr.mxu0 %v1535
    %1658 = vmatpush1.msra.mxu0 %v1534
    %1659 = vmatprep.subr.mxu0 %v1539
    %1660 = vmatpush1.msra.mxu0 %v1538
    %1661 = vmatprep.subr.mxu0 %v1543
    %1662 = vmatpush1.msra.mxu0 %v1542
    %1663 = vmatprep.subr.mxu0 %v1547
    %1664 = vmatpush1.msra.mxu0 %v1546
    %1665 = vmatprep.subr.mxu0 %v1551
    %1666 = vmatpush1.msra.mxu0 %v1550
    %1667 = vmatprep.subr.mxu0 %v1555
    %1668 = vmatpush1.msra.mxu0 %v1554
    %1669 = vmatprep.subr.mxu0 %v1559
    %1670 = vmatpush1.msra.mxu0 %v1558
    %1671 = vmatprep.subr.mxu0 %v1563
    %1672 = vmatpush1.msra.mxu0 %v1562
    %1673 = vmatprep.subr.mxu0 %v1567
    %1674 = vmatpush1.msra.mxu0 %v1566
    %1675 = vmatprep.subr.mxu0 %v1571
    %1676 = vmatpush1.msra.mxu0 %v1570
    %1677 = vmatprep.subr.mxu0 %v1575
    %1678 = vmatpush1.msra.mxu0 %v1574
    %1679 = vmatprep.subr.mxu0 0.0
    %1680 = vmatpush1.msra.mxu0 0.0
    %1681 = vmatprep.subr.mxu0 0.0
    %1682 = vmatpush1.msra.mxu0 0.0
    %1683 = vmatprep.subr.mxu0 0.0
    %1684 = vmatpush1.msra.mxu0 0.0
    %1685 = vmatprep.subr.mxu0 0.0
    %1686 = vmatpush1.msra.mxu0 0.0
    %1687 = vmatprep.subr.mxu0 0.0
    %1688 = vmatpush1.msra.mxu0 0.0
    %1689 = vmatprep.subr.mxu0 0.0
    %1690 = vmatpush1.msra.mxu0 0.0
    %1691 = vmatprep.subr.mxu0 0.0
    %1692 = vmatpush1.msra.mxu0 0.0
    %1693 = vmatprep.subr.mxu0 0.0
    %1694 = vmatpush1.msra.mxu0 0.0
    %1695 = vmatprep.subr.mxu0 0.0
    %1696 = vmatpush1.msra.mxu0 0.0
    %1697 = vmatprep.subr.mxu0 0.0
    %1698 = vmatpush1.msra.mxu0 0.0
    %1699 = vmatprep.subr.mxu0 0.0
    %1700 = vmatpush1.msra.mxu0 0.0
    %1701 = vmatprep.subr.mxu0 0.0
    %1702 = vmatpush1.msra.mxu0 0.0
    %1703 = vmatprep.subr.mxu0 0.0
    %1704 = vmatpush1.msra.mxu0 0.0
    %1705 = vmatprep.subr.mxu0 0.0
    %1706 = vmatpush1.msra.mxu0 0.0
    %1707 = vmatprep.subr.mxu0 0.0
    %1708 = vmatpush1.msra.mxu0 0.0
    %1709 = vmatprep.subr.mxu0 0.0
    %1710 = vmatpush1.msra.mxu0 0.0
    %1711 = vmatprep.mubr.f32.mxu0 0.0
    %1712 = vmatmul.mubr.f32.gmra.mrb[0].mxu0 %v1510
    %v1713 = vpop.f32.mrb[0].mxu0
    %v1714 = vadd.f32 0.0, %v1713
    %v1715 = vpop.f32.mrb[0].mxu0
    %v1716 = vadd.f32 0.0, %v1715
    %1717 = vdwg.mxu0
    %v1718 = vadd.f32 %v208, %v1643
    %v1719 = vadd.f32 %v210, %v1645
    %v1720 = vadd.f32 %v321, %v1714
    %v1721 = vadd.f32 %v323, %v1716
    %v1722 = vxor.u32 %v1718, 2147483648
    %v1723 = vmul.f32 %v1722, 1.442695
    %v1724 = vpow.pop %v1723
    %v1725 = vadd.f32 %v1724, 1.0
    %v1726 = vrcp.pop %v1725
    %v1727 = vmul.f32 1.0, %v1726
    %v1728 = vxor.u32 %v1719, 2147483648
    %v1729 = vmul.f32 %v1728, 1.442695
    %v1730 = vpow.pop %v1729
    %v1731 = vadd.f32 %v1730, 1.0
    %v1732 = vrcp.pop %v1731
    %v1733 = vmul.f32 1.0, %v1732
    %v1734 = vtanh.pop %v1720
    %v1735 = vxor.u32 %v1721, 2147483648
    %v1736 = vmul.f32 %v1735, 1.442695
    %v1737 = vpow.pop %v1736
    %v1738 = vadd.f32 %v1737, 1.0
    %v1739 = vrcp.pop %v1738
    %v1740 = vmul.f32 1.0, %v1739
    %v1741 = vmul.f32 %v1733, %v1508
    %v1742 = vmul.f32 %v1727, %v1734
    %v1743 = vadd.f32 %v1741, %v1742
    %v1744 = vtanh.pop %v1743
    %v1745 = vmul.f32 %v1740, %v1744
    %1746 = vst [vmem:[#allocation2 + $0x28] sm:$0xff] %v1745
    %v1747 = vld [vmem:[#allocation3] sm:$0xff]
    %v1748 = vld [vmem:[#allocation3 + $0x8] sm:$0xff]
    %v1749 = vld [vmem:[#allocation3 + $0x10] sm:$0xff]
    %v1750 = vld [vmem:[#allocation3 + $0x18] sm:$0xff]
    %v1751 = vld [vmem:[#allocation3 + $0x20] sm:$0xff]
    %v1752 = vld [vmem:[#allocation3 + $0x28] sm:$0xff]
    %v1753 = vld [vmem:[#allocation3 + $0x30] sm:$0xff]
    %v1754 = vld [vmem:[#allocation3 + $0x38] sm:$0xff]
    %v1755 = vld [vmem:[#allocation3 + $0x40] sm:$0xff]
    %v1756 = vld [vmem:[#allocation3 + $0x48] sm:$0xff]
    %v1757 = vld [vmem:[#allocation3 + $0x50] sm:$0xff]
    %v1758 = vld [vmem:[#allocation3 + $0x58] sm:$0xff]
    %v1759 = vld [vmem:[#allocation3 + $0x60] sm:$0xff]
    %v1760 = vld [vmem:[#allocation3 + $0x68] sm:$0xff]
    %v1761 = vld [vmem:[#allocation3 + $0x70] sm:$0xff]
    %v1762 = vld [vmem:[#allocation3 + $0x78] sm:$0xff]
    %v1763 = vld [vmem:[#allocation3 + $0x80] sm:$0xff]
    %v1764 = vld [vmem:[#allocation3 + $0x88] sm:$0xff]
    %v1765 = vld [vmem:[#allocation3 + $0x90] sm:$0xff]
    %v1766 = vld [vmem:[#allocation3 + $0x98] sm:$0xff]
    %v1767 = vld [vmem:[#allocation3 + $0xa0] sm:$0xff]
    %v1768 = vld [vmem:[#allocation3 + $0xa8] sm:$0xff]
    %v1769 = vld [vmem:[#allocation3 + $0xb0] sm:$0xff]
    %v1770 = vld [vmem:[#allocation3 + $0xb8] sm:$0xff]
    %v1771 = vld [vmem:[#allocation3 + $0xc0] sm:$0xff]
    %v1772 = vld [vmem:[#allocation3 + $0xc8] sm:$0xff]
    %v1773 = vld [vmem:[#allocation3 + $0xd0] sm:$0xff]
    %v1774 = vld [vmem:[#allocation3 + $0xd8] sm:$0xff]
    %v1775 = vld [vmem:[#allocation3 + $0xe0] sm:$0xff]
    %v1776 = vld [vmem:[#allocation3 + $0xe8] sm:$0xff]
    %v1777 = vld [vmem:[#allocation3 + $0xf0] sm:$0xff]
    %v1778 = vld [vmem:[#allocation3 + $0xf8] sm:$0xff]
    %v1779 = vld [vmem:[#allocation3 + $0x100] sm:$0xff]
    %v1780 = vld [vmem:[#allocation3 + $0x108] sm:$0xff]
    %v1781 = vld [vmem:[#allocation3 + $0x110] sm:$0xff]
    %v1782 = vld [vmem:[#allocation3 + $0x118] sm:$0xff]
    %v1783 = vld [vmem:[#allocation3 + $0x120] sm:$0xff]
    %v1784 = vld [vmem:[#allocation3 + $0x128] sm:$0xff]
    %v1785 = vld [vmem:[#allocation3 + $0x130] sm:$0xff]
    %v1786 = vld [vmem:[#allocation3 + $0x138] sm:$0xff]
    %v1787 = vld [vmem:[#allocation3 + $0x140] sm:$0xff]
    %v1788 = vld [vmem:[#allocation3 + $0x148] sm:$0xff]
    %v1789 = vld [vmem:[#allocation3 + $0x150] sm:$0xff]
    %v1790 = vld [vmem:[#allocation3 + $0x158] sm:$0xff]
    %v1791 = vld [vmem:[#allocation3 + $0x160] sm:$0xff]
    %v1792 = vld [vmem:[#allocation3 + $0x168] sm:$0xff]
    %v1793 = vld [vmem:[#allocation3 + $0x170] sm:$0xff]
    %v1794 = vld [vmem:[#allocation3 + $0x178] sm:$0xff]
    %v1795 = vld [vmem:[#allocation3 + $0x180] sm:$0xff]
    %v1796 = vld [vmem:[#allocation3 + $0x188] sm:$0xff]
    %v1797 = vld [vmem:[#allocation3 + $0x190] sm:$0xff]
    %v1798 = vld [vmem:[#allocation3 + $0x198] sm:$0xff]
    %v1799 = vld [vmem:[#allocation3 + $0x1a0] sm:$0xff]
    %v1800 = vld [vmem:[#allocation3 + $0x1a8] sm:$0xff]
    %v1801 = vld [vmem:[#allocation3 + $0x1b0] sm:$0xff]
    %v1802 = vld [vmem:[#allocation3 + $0x1b8] sm:$0xff]
    %v1803 = vld [vmem:[#allocation3 + $0x1c0] sm:$0xff]
    %v1804 = vld [vmem:[#allocation3 + $0x1c8] sm:$0xff]
    %v1805 = vld [vmem:[#allocation3 + $0x1d0] sm:$0xff]
    %v1806 = vld [vmem:[#allocation3 + $0x1d8] sm:$0xff]
    %v1807 = vld [vmem:[#allocation3 + $0x1e0] sm:$0xff]
    %v1808 = vld [vmem:[#allocation3 + $0x1e8] sm:$0xff]
    %v1809 = vld [vmem:[#allocation3 + $0x1f0] sm:$0xff]
    %v1810 = vld [vmem:[#allocation3 + $0x1f8] sm:$0xff]
    %1811 = vmatprep.subr.mxu0 %v1748
    %1812 = vmatpush1.msra.mxu0 %v1747
    %1813 = vmatprep.subr.mxu0 %v1752
    %1814 = vmatpush1.msra.mxu0 %v1751
    %1815 = vmatprep.subr.mxu0 %v1756
    %1816 = vmatpush1.msra.mxu0 %v1755
    %1817 = vmatprep.subr.mxu0 %v1760
    %1818 = vmatpush1.msra.mxu0 %v1759
    %1819 = vmatprep.subr.mxu0 %v1764
    %1820 = vmatpush1.msra.mxu0 %v1763
    %1821 = vmatprep.subr.mxu0 %v1768
    %1822 = vmatpush1.msra.mxu0 %v1767
    %1823 = vmatprep.subr.mxu0 %v1772
    %1824 = vmatpush1.msra.mxu0 %v1771
    %1825 = vmatprep.subr.mxu0 %v1776
    %1826 = vmatpush1.msra.mxu0 %v1775
    %1827 = vmatprep.subr.mxu0 %v1780
    %1828 = vmatpush1.msra.mxu0 %v1779
    %1829 = vmatprep.subr.mxu0 %v1784
    %1830 = vmatpush1.msra.mxu0 %v1783
    %1831 = vmatprep.subr.mxu0 %v1788
    %1832 = vmatpush1.msra.mxu0 %v1787
    %1833 = vmatprep.subr.mxu0 %v1792
    %1834 = vmatpush1.msra.mxu0 %v1791
    %1835 = vmatprep.subr.mxu0 %v1796
    %1836 = vmatpush1.msra.mxu0 %v1795
    %1837 = vmatprep.subr.mxu0 %v1800
    %1838 = vmatpush1.msra.mxu0 %v1799
    %1839 = vmatprep.subr.mxu0 %v1804
    %1840 = vmatpush1.msra.mxu0 %v1803
    %1841 = vmatprep.subr.mxu0 %v1808
    %1842 = vmatpush1.msra.mxu0 %v1807
    %1843 = vmatprep.subr.mxu0 0.0
    %1844 = vmatpush1.msra.mxu0 0.0
    %1845 = vmatprep.subr.mxu0 0.0
    %1846 = vmatpush1.msra.mxu0 0.0
    %1847 = vmatprep.subr.mxu0 0.0
    %1848 = vmatpush1.msra.mxu0 0.0
    %1849 = vmatprep.subr.mxu0 0.0
    %1850 = vmatpush1.msra.mxu0 0.0
    %1851 = vmatprep.subr.mxu0 0.0
    %1852 = vmatpush1.msra.mxu0 0.0
    %1853 = vmatprep.subr.mxu0 0.0
    %1854 = vmatpush1.msra.mxu0 0.0
    %1855 = vmatprep.subr.mxu0 0.0
    %1856 = vmatpush1.msra.mxu0 0.0
    %1857 = vmatprep.subr.mxu0 0.0
    %1858 = vmatpush1.msra.mxu0 0.0
    %1859 = vmatprep.subr.mxu0 0.0
    %1860 = vmatpush1.msra.mxu0 0.0
    %1861 = vmatprep.subr.mxu0 0.0
    %1862 = vmatpush1.msra.mxu0 0.0
    %1863 = vmatprep.subr.mxu0 0.0
    %1864 = vmatpush1.msra.mxu0 0.0
    %1865 = vmatprep.subr.mxu0 0.0
    %1866 = vmatpush1.msra.mxu0 0.0
    %1867 = vmatprep.subr.mxu0 0.0
    %1868 = vmatpush1.msra.mxu0 0.0
    %1869 = vmatprep.subr.mxu0 0.0
    %1870 = vmatpush1.msra.mxu0 0.0
    %1871 = vmatprep.subr.mxu0 0.0
    %1872 = vmatpush1.msra.mxu0 0.0
    %1873 = vmatprep.subr.mxu0 0.0
    %1874 = vmatpush1.msra.mxu0 0.0
    %1875 = vmatprep.mubr.f32.mxu0 0.0
    %1876 = vmatmul.mubr.f32.gmra.mrb[0].mxu0 %v1745
    %v1877 = vpop.f32.mrb[0].mxu0
    %v1878 = vadd.f32 0.0, %v1877
    %v1879 = vpop.f32.mrb[0].mxu0
    %v1880 = vadd.f32 0.0, %v1879
    %1881 = vdwg.mxu0
    %1882 = vmatprep.subr.mxu0 %v1750
    %1883 = vmatpush1.msra.mxu0 %v1749
    %1884 = vmatprep.subr.mxu0 %v1754
    %1885 = vmatpush1.msra.mxu0 %v1753
    %1886 = vmatprep.subr.mxu0 %v1758
    %1887 = vmatpush1.msra.mxu0 %v1757
    %1888 = vmatprep.subr.mxu0 %v1762
    %1889 = vmatpush1.msra.mxu0 %v1761
    %1890 = vmatprep.subr.mxu0 %v1766
    %1891 = vmatpush1.msra.mxu0 %v1765
    %1892 = vmatprep.subr.mxu0 %v1770
    %1893 = vmatpush1.msra.mxu0 %v1769
    %1894 = vmatprep.subr.mxu0 %v1774
    %1895 = vmatpush1.msra.mxu0 %v1773
    %1896 = vmatprep.subr.mxu0 %v1778
    %1897 = vmatpush1.msra.mxu0 %v1777
    %1898 = vmatprep.subr.mxu0 %v1782
    %1899 = vmatpush1.msra.mxu0 %v1781
    %1900 = vmatprep.subr.mxu0 %v1786
    %1901 = vmatpush1.msra.mxu0 %v1785
    %1902 = vmatprep.subr.mxu0 %v1790
    %1903 = vmatpush1.msra.mxu0 %v1789
    %1904 = vmatprep.subr.mxu0 %v1794
    %1905 = vmatpush1.msra.mxu0 %v1793
    %1906 = vmatprep.subr.mxu0 %v1798
    %1907 = vmatpush1.msra.mxu0 %v1797
    %1908 = vmatprep.subr.mxu0 %v1802
    %1909 = vmatpush1.msra.mxu0 %v1801
    %1910 = vmatprep.subr.mxu0 %v1806
    %1911 = vmatpush1.msra.mxu0 %v1805
    %1912 = vmatprep.subr.mxu0 %v1810
    %1913 = vmatpush1.msra.mxu0 %v1809
    %1914 = vmatprep.subr.mxu0 0.0
    %1915 = vmatpush1.msra.mxu0 0.0
    %1916 = vmatprep.subr.mxu0 0.0
    %1917 = vmatpush1.msra.mxu0 0.0
    %1918 = vmatprep.subr.mxu0 0.0
    %1919 = vmatpush1.msra.mxu0 0.0
    %1920 = vmatprep.subr.mxu0 0.0
    %1921 = vmatpush1.msra.mxu0 0.0
    %1922 = vmatprep.subr.mxu0 0.0
    %1923 = vmatpush1.msra.mxu0 0.0
    %1924 = vmatprep.subr.mxu0 0.0
    %1925 = vmatpush1.msra.mxu0 0.0
    %1926 = vmatprep.subr.mxu0 0.0
    %1927 = vmatpush1.msra.mxu0 0.0
    %1928 = vmatprep.subr.mxu0 0.0
    %1929 = vmatpush1.msra.mxu0 0.0
    %1930 = vmatprep.subr.mxu0 0.0
    %1931 = vmatpush1.msra.mxu0 0.0
    %1932 = vmatprep.subr.mxu0 0.0
    %1933 = vmatpush1.msra.mxu0 0.0
    %1934 = vmatprep.subr.mxu0 0.0
    %1935 = vmatpush1.msra.mxu0 0.0
    %1936 = vmatprep.subr.mxu0 0.0
    %1937 = vmatpush1.msra.mxu0 0.0
    %1938 = vmatprep.subr.mxu0 0.0
    %1939 = vmatpush1.msra.mxu0 0.0
    %1940 = vmatprep.subr.mxu0 0.0
    %1941 = vmatpush1.msra.mxu0 0.0
    %1942 = vmatprep.subr.mxu0 0.0
    %1943 = vmatpush1.msra.mxu0 0.0
    %1944 = vmatprep.subr.mxu0 0.0
    %1945 = vmatpush1.msra.mxu0 0.0
    %1946 = vmatprep.mubr.f32.mxu0 0.0
    %1947 = vmatmul.mubr.f32.gmra.mrb[0].mxu0 %v1745
    %v1948 = vpop.f32.mrb[0].mxu0
    %v1949 = vadd.f32 0.0, %v1948
    %v1950 = vpop.f32.mrb[0].mxu0
    %v1951 = vadd.f32 0.0, %v1950
    %1952 = vdwg.mxu0
    %v1953 = vadd.f32 %v214, %v1878
    %v1954 = vadd.f32 %v216, %v1880
    %v1955 = vadd.f32 %v327, %v1949
    %v1956 = vadd.f32 %v329, %v1951
    %v1957 = vxor.u32 %v1953, 2147483648
    %v1958 = vmul.f32 %v1957, 1.442695
    %v1959 = vpow.pop %v1958
    %v1960 = vadd.f32 %v1959, 1.0
    %v1961 = vrcp.pop %v1960
    %v1962 = vmul.f32 1.0, %v1961
    %v1963 = vxor.u32 %v1954, 2147483648
    %v1964 = vmul.f32 %v1963, 1.442695
    %v1965 = vpow.pop %v1964
    %v1966 = vadd.f32 %v1965, 1.0
    %v1967 = vrcp.pop %v1966
    %v1968 = vmul.f32 1.0, %v1967
    %v1969 = vtanh.pop %v1955
    %v1970 = vxor.u32 %v1956, 2147483648
    %v1971 = vmul.f32 %v1970, 1.442695
    %v1972 = vpow.pop %v1971
    %v1973 = vadd.f32 %v1972, 1.0
    %v1974 = vrcp.pop %v1973
    %v1975 = vmul.f32 1.0, %v1974
    %v1976 = vmul.f32 %v1968, %v1743
    %v1977 = vmul.f32 %v1962, %v1969
    %v1978 = vadd.f32 %v1976, %v1977
    %v1979 = vtanh.pop %v1978
    %v1980 = vmul.f32 %v1975, %v1979
    %1981 = vst [vmem:[#allocation2 + $0x30] sm:$0xff] %v1980
    %v1982 = vld [vmem:[#allocation3] sm:$0xff]
    %v1983 = vld [vmem:[#allocation3 + $0x8] sm:$0xff]
    %v1984 = vld [vmem:[#allocation3 + $0x10] sm:$0xff]
    %v1985 = vld [vmem:[#allocation3 + $0x18] sm:$0xff]
    %v1986 = vld [vmem:[#allocation3 + $0x20] sm:$0xff]
    %v1987 = vld [vmem:[#allocation3 + $0x28] sm:$0xff]
    %v1988 = vld [vmem:[#allocation3 + $0x30] sm:$0xff]
    %v1989 = vld [vmem:[#allocation3 + $0x38] sm:$0xff]
    %v1990 = vld [vmem:[#allocation3 + $0x40] sm:$0xff]
    %v1991 = vld [vmem:[#allocation3 + $0x48] sm:$0xff]
    %v1992 = vld [vmem:[#allocation3 + $0x50] sm:$0xff]
    %v1993 = vld [vmem:[#allocation3 + $0x58] sm:$0xff]
    %v1994 = vld [vmem:[#allocation3 + $0x60] sm:$0xff]
    %v1995 = vld [vmem:[#allocation3 + $0x68] sm:$0xff]
    %v1996 = vld [vmem:[#allocation3 + $0x70] sm:$0xff]
    %v1997 = vld [vmem:[#allocation3 + $0x78] sm:$0xff]
    %v1998 = vld [vmem:[#allocation3 + $0x80] sm:$0xff]
    %v1999 = vld [vmem:[#allocation3 + $0x88] sm:$0xff]
    %v2000 = vld [vmem:[#allocation3 + $0x90] sm:$0xff]
    %v2001 = vld [vmem:[#allocation3 + $0x98] sm:$0xff]
    %v2002 = vld [vmem:[#allocation3 + $0xa0] sm:$0xff]
    %v2003 = vld [vmem:[#allocation3 + $0xa8] sm:$0xff]
    %v2004 = vld [vmem:[#allocation3 + $0xb0] sm:$0xff]
    %v2005 = vld [vmem:[#allocation3 + $0xb8] sm:$0xff]
    %v2006 = vld [vmem:[#allocation3 + $0xc0] sm:$0xff]
    %v2007 = vld [vmem:[#allocation3 + $0xc8] sm:$0xff]
    %v2008 = vld [vmem:[#allocation3 + $0xd0] sm:$0xff]
    %v2009 = vld [vmem:[#allocation3 + $0xd8] sm:$0xff]
    %v2010 = vld [vmem:[#allocation3 + $0xe0] sm:$0xff]
    %v2011 = vld [vmem:[#allocation3 + $0xe8] sm:$0xff]
    %v2012 = vld [vmem:[#allocation3 + $0xf0] sm:$0xff]
    %v2013 = vld [vmem:[#allocation3 + $0xf8] sm:$0xff]
    %v2014 = vld [vmem:[#allocation3 + $0x100] sm:$0xff]
    %v2015 = vld [vmem:[#allocation3 + $0x108] sm:$0xff]
    %v2016 = vld [vmem:[#allocation3 + $0x110] sm:$0xff]
    %v2017 = vld [vmem:[#allocation3 + $0x118] sm:$0xff]
    %v2018 = vld [vmem:[#allocation3 + $0x120] sm:$0xff]
    %v2019 = vld [vmem:[#allocation3 + $0x128] sm:$0xff]
    %v2020 = vld [vmem:[#allocation3 + $0x130] sm:$0xff]
    %v2021 = vld [vmem:[#allocation3 + $0x138] sm:$0xff]
    %v2022 = vld [vmem:[#allocation3 + $0x140] sm:$0xff]
    %v2023 = vld [vmem:[#allocation3 + $0x148] sm:$0xff]
    %v2024 = vld [vmem:[#allocation3 + $0x150] sm:$0xff]
    %v2025 = vld [vmem:[#allocation3 + $0x158] sm:$0xff]
    %v2026 = vld [vmem:[#allocation3 + $0x160] sm:$0xff]
    %v2027 = vld [vmem:[#allocation3 + $0x168] sm:$0xff]
    %v2028 = vld [vmem:[#allocation3 + $0x170] sm:$0xff]
    %v2029 = vld [vmem:[#allocation3 + $0x178] sm:$0xff]
    %v2030 = vld [vmem:[#allocation3 + $0x180] sm:$0xff]
    %v2031 = vld [vmem:[#allocation3 + $0x188] sm:$0xff]
    %v2032 = vld [vmem:[#allocation3 + $0x190] sm:$0xff]
    %v2033 = vld [vmem:[#allocation3 + $0x198] sm:$0xff]
    %v2034 = vld [vmem:[#allocation3 + $0x1a0] sm:$0xff]
    %v2035 = vld [vmem:[#allocation3 + $0x1a8] sm:$0xff]
    %v2036 = vld [vmem:[#allocation3 + $0x1b0] sm:$0xff]
    %v2037 = vld [vmem:[#allocation3 + $0x1b8] sm:$0xff]
    %v2038 = vld [vmem:[#allocation3 + $0x1c0] sm:$0xff]
    %v2039 = vld [vmem:[#allocation3 + $0x1c8] sm:$0xff]
    %v2040 = vld [vmem:[#allocation3 + $0x1d0] sm:$0xff]
    %v2041 = vld [vmem:[#allocation3 + $0x1d8] sm:$0xff]
    %v2042 = vld [vmem:[#allocation3 + $0x1e0] sm:$0xff]
    %v2043 = vld [vmem:[#allocation3 + $0x1e8] sm:$0xff]
    %v2044 = vld [vmem:[#allocation3 + $0x1f0] sm:$0xff]
    %v2045 = vld [vmem:[#allocation3 + $0x1f8] sm:$0xff]
    %2046 = vmatprep.subr.mxu0 %v1983
    %2047 = vmatpush1.msra.mxu0 %v1982
    %2048 = vmatprep.subr.mxu0 %v1987
    %2049 = vmatpush1.msra.mxu0 %v1986
    %2050 = vmatprep.subr.mxu0 %v1991
    %2051 = vmatpush1.msra.mxu0 %v1990
    %2052 = vmatprep.subr.mxu0 %v1995
    %2053 = vmatpush1.msra.mxu0 %v1994
    %2054 = vmatprep.subr.mxu0 %v1999
    %2055 = vmatpush1.msra.mxu0 %v1998
    %2056 = vmatprep.subr.mxu0 %v2003
    %2057 = vmatpush1.msra.mxu0 %v2002
    %2058 = vmatprep.subr.mxu0 %v2007
    %2059 = vmatpush1.msra.mxu0 %v2006
    %2060 = vmatprep.subr.mxu0 %v2011
    %2061 = vmatpush1.msra.mxu0 %v2010
    %2062 = vmatprep.subr.mxu0 %v2015
    %2063 = vmatpush1.msra.mxu0 %v2014
    %2064 = vmatprep.subr.mxu0 %v2019
    %2065 = vmatpush1.msra.mxu0 %v2018
    %2066 = vmatprep.subr.mxu0 %v2023
    %2067 = vmatpush1.msra.mxu0 %v2022
    %2068 = vmatprep.subr.mxu0 %v2027
    %2069 = vmatpush1.msra.mxu0 %v2026
    %2070 = vmatprep.subr.mxu0 %v2031
    %2071 = vmatpush1.msra.mxu0 %v2030
    %2072 = vmatprep.subr.mxu0 %v2035
    %2073 = vmatpush1.msra.mxu0 %v2034
    %2074 = vmatprep.subr.mxu0 %v2039
    %2075 = vmatpush1.msra.mxu0 %v2038
    %2076 = vmatprep.subr.mxu0 %v2043
    %2077 = vmatpush1.msra.mxu0 %v2042
    %2078 = vmatprep.subr.mxu0 0.0
    %2079 = vmatpush1.msra.mxu0 0.0
    %2080 = vmatprep.subr.mxu0 0.0
    %2081 = vmatpush1.msra.mxu0 0.0
    %2082 = vmatprep.subr.mxu0 0.0
    %2083 = vmatpush1.msra.mxu0 0.0
    %2084 = vmatprep.subr.mxu0 0.0
    %2085 = vmatpush1.msra.mxu0 0.0
    %2086 = vmatprep.subr.mxu0 0.0
    %2087 = vmatpush1.msra.mxu0 0.0
    %2088 = vmatprep.subr.mxu0 0.0
    %2089 = vmatpush1.msra.mxu0 0.0
    %2090 = vmatprep.subr.mxu0 0.0
    %2091 = vmatpush1.msra.mxu0 0.0
    %2092 = vmatprep.subr.mxu0 0.0
    %2093 = vmatpush1.msra.mxu0 0.0
    %2094 = vmatprep.subr.mxu0 0.0
    %2095 = vmatpush1.msra.mxu0 0.0
    %2096 = vmatprep.subr.mxu0 0.0
    %2097 = vmatpush1.msra.mxu0 0.0
    %2098 = vmatprep.subr.mxu0 0.0
    %2099 = vmatpush1.msra.mxu0 0.0
    %2100 = vmatprep.subr.mxu0 0.0
    %2101 = vmatpush1.msra.mxu0 0.0
    %2102 = vmatprep.subr.mxu0 0.0
    %2103 = vmatpush1.msra.mxu0 0.0
    %2104 = vmatprep.subr.mxu0 0.0
    %2105 = vmatpush1.msra.mxu0 0.0
    %2106 = vmatprep.subr.mxu0 0.0
    %2107 = vmatpush1.msra.mxu0 0.0
    %2108 = vmatprep.subr.mxu0 0.0
    %2109 = vmatpush1.msra.mxu0 0.0
    %2110 = vmatprep.mubr.f32.mxu0 0.0
    %2111 = vmatmul.mubr.f32.gmra.mrb[0].mxu0 %v1980
    %v2112 = vpop.f32.mrb[0].mxu0
    %v2113 = vadd.f32 0.0, %v2112
    %v2114 = vpop.f32.mrb[0].mxu0
    %v2115 = vadd.f32 0.0, %v2114
    %2116 = vdwg.mxu0
    %2117 = vmatprep.subr.mxu0 %v1985
    %2118 = vmatpush1.msra.mxu0 %v1984
    %2119 = vmatprep.subr.mxu0 %v1989
    %2120 = vmatpush1.msra.mxu0 %v1988
    %2121 = vmatprep.subr.mxu0 %v1993
    %2122 = vmatpush1.msra.mxu0 %v1992
    %2123 = vmatprep.subr.mxu0 %v1997
    %2124 = vmatpush1.msra.mxu0 %v1996
    %2125 = vmatprep.subr.mxu0 %v2001
    %2126 = vmatpush1.msra.mxu0 %v2000
    %2127 = vmatprep.subr.mxu0 %v2005
    %2128 = vmatpush1.msra.mxu0 %v2004
    %2129 = vmatprep.subr.mxu0 %v2009
    %2130 = vmatpush1.msra.mxu0 %v2008
    %2131 = vmatprep.subr.mxu0 %v2013
    %2132 = vmatpush1.msra.mxu0 %v2012
    %2133 = vmatprep.subr.mxu0 %v2017
    %2134 = vmatpush1.msra.mxu0 %v2016
    %2135 = vmatprep.subr.mxu0 %v2021
    %2136 = vmatpush1.msra.mxu0 %v2020
    %2137 = vmatprep.subr.mxu0 %v2025
    %2138 = vmatpush1.msra.mxu0 %v2024
    %2139 = vmatprep.subr.mxu0 %v2029
    %2140 = vmatpush1.msra.mxu0 %v2028
    %2141 = vmatprep.subr.mxu0 %v2033
    %2142 = vmatpush1.msra.mxu0 %v2032
    %2143 = vmatprep.subr.mxu0 %v2037
    %2144 = vmatpush1.msra.mxu0 %v2036
    %2145 = vmatprep.subr.mxu0 %v2041
    %2146 = vmatpush1.msra.mxu0 %v2040
    %2147 = vmatprep.subr.mxu0 %v2045
    %2148 = vmatpush1.msra.mxu0 %v2044
    %2149 = vmatprep.subr.mxu0 0.0
    %2150 = vmatpush1.msra.mxu0 0.0
    %2151 = vmatprep.subr.mxu0 0.0
    %2152 = vmatpush1.msra.mxu0 0.0
    %2153 = vmatprep.subr.mxu0 0.0
    %2154 = vmatpush1.msra.mxu0 0.0
    %2155 = vmatprep.subr.mxu0 0.0
    %2156 = vmatpush1.msra.mxu0 0.0
    %2157 = vmatprep.subr.mxu0 0.0
    %2158 = vmatpush1.msra.mxu0 0.0
    %2159 = vmatprep.subr.mxu0 0.0
    %2160 = vmatpush1.msra.mxu0 0.0
    %2161 = vmatprep.subr.mxu0 0.0
    %2162 = vmatpush1.msra.mxu0 0.0
    %2163 = vmatprep.subr.mxu0 0.0
    %2164 = vmatpush1.msra.mxu0 0.0
    %2165 = vmatprep.subr.mxu0 0.0
    %2166 = vmatpush1.msra.mxu0 0.0
    %2167 = vmatprep.subr.mxu0 0.0
    %2168 = vmatpush1.msra.mxu0 0.0
    %2169 = vmatprep.subr.mxu0 0.0
    %2170 = vmatpush1.msra.mxu0 0.0
    %2171 = vmatprep.subr.mxu0 0.0
    %2172 = vmatpush1.msra.mxu0 0.0
    %2173 = vmatprep.subr.mxu0 0.0
    %2174 = vmatpush1.msra.mxu0 0.0
    %2175 = vmatprep.subr.mxu0 0.0
    %2176 = vmatpush1.msra.mxu0 0.0
    %2177 = vmatprep.subr.mxu0 0.0
    %2178 = vmatpush1.msra.mxu0 0.0
    %2179 = vmatprep.subr.mxu0 0.0
    %2180 = vmatpush1.msra.mxu0 0.0
    %2181 = vmatprep.mubr.f32.mxu0 0.0
    %2182 = vmatmul.mubr.f32.gmra.mrb[0].mxu0 %v1980
    %v2183 = vpop.f32.mrb[0].mxu0
    %v2184 = vadd.f32 0.0, %v2183
    %v2185 = vpop.f32.mrb[0].mxu0
    %v2186 = vadd.f32 0.0, %v2185
    %2187 = vdwg.mxu0
    %v2188 = vadd.f32 %v220, %v2113
    %v2189 = vadd.f32 %v222, %v2115
    %v2190 = vadd.f32 %v333, %v2184
    %v2191 = vadd.f32 %v335, %v2186
    %v2192 = vxor.u32 %v2188, 2147483648
    %v2193 = vmul.f32 %v2192, 1.442695
    %v2194 = vpow.pop %v2193
    %v2195 = vadd.f32 %v2194, 1.0
    %v2196 = vrcp.pop %v2195
    %v2197 = vmul.f32 1.0, %v2196
    %v2198 = vxor.u32 %v2189, 2147483648
    %v2199 = vmul.f32 %v2198, 1.442695
    %v2200 = vpow.pop %v2199
    %v2201 = vadd.f32 %v2200, 1.0
    %v2202 = vrcp.pop %v2201
    %v2203 = vmul.f32 1.0, %v2202
    %v2204 = vtanh.pop %v2190
    %v2205 = vxor.u32 %v2191, 2147483648
    %v2206 = vmul.f32 %v2205, 1.442695
    %v2207 = vpow.pop %v2206
    %v2208 = vadd.f32 %v2207, 1.0
    %v2209 = vrcp.pop %v2208
    %v2210 = vmul.f32 1.0, %v2209
    %v2211 = vmul.f32 %v2203, %v1978
    %v2212 = vmul.f32 %v2197, %v2204
    %v2213 = vadd.f32 %v2211, %v2212
    %v2214 = vtanh.pop %v2213
    %v2215 = vmul.f32 %v2210, %v2214
    %2216 = vst [vmem:[#allocation2 + $0x38] sm:$0xff] %v2215
    %v2217 = vld [vmem:[#allocation2] sm:$0xff]
    %v2218 = vld [vmem:[#allocation2 + $0x8] sm:$0xff]
    %v2219 = vld [vmem:[#allocation2 + $0x10] sm:$0xff]
    %v2220 = vld [vmem:[#allocation2 + $0x18] sm:$0xff]
    %v2221 = vld [vmem:[#allocation2 + $0x20] sm:$0xff]
    %v2222 = vld [vmem:[#allocation2 + $0x28] sm:$0xff]
    %v2223 = vld [vmem:[#allocation2 + $0x30] sm:$0xff]
    %v2224 = vld [vmem:[#allocation2 + $0x38] sm:$0xff]
    %v2225 = vld [vmem:[#allocation6] sm:$0xff]
    %v2226 = vld [vmem:[#allocation6 + $0x8] sm:$0xff]
    %v2227 = vld [vmem:[#allocation6 + $0x10] sm:$0xff]
    %v2228 = vld [vmem:[#allocation6 + $0x18] sm:$0xff]
    %v2229 = vld [vmem:[#allocation6 + $0x20] sm:$0xff]
    %v2230 = vld [vmem:[#allocation6 + $0x28] sm:$0xff]
    %v2231 = vld [vmem:[#allocation6 + $0x30] sm:$0xff]
    %v2232 = vld [vmem:[#allocation6 + $0x38] sm:$0xff]
    %v2233 = vld [vmem:[#allocation6 + $0x40] sm:$0xff]
    %v2234 = vld [vmem:[#allocation6 + $0x48] sm:$0xff]
    %v2235 = vld [vmem:[#allocation6 + $0x50] sm:$0xff]
    %v2236 = vld [vmem:[#allocation6 + $0x58] sm:$0xff]
    %v2237 = vld [vmem:[#allocation6 + $0x60] sm:$0xff]
    %v2238 = vld [vmem:[#allocation6 + $0x68] sm:$0xff]
    %v2239 = vld [vmem:[#allocation6 + $0x70] sm:$0xff]
    %v2240 = vld [vmem:[#allocation6 + $0x78] sm:$0xff]
    %v2241 = vld [vmem:[%s5] sm:$0x1]
    %v2243 = vlaneseq
    %v2244 = vshrl.u32 %v2243, 7
    %v2245 = vsub.s32 0, %v2244
    %v2246 = vrot.slane %v2241, %v2245
    %2248 = vmatprep.subr.mxu0 0.0
    %2249 = vmatpush1.msra.mxu0 %v2225
    %2250 = vmatprep.subr.mxu0 0.0
    %2251 = vmatpush1.msra.mxu0 %v2226
    %2252 = vmatprep.subr.mxu0 0.0
    %2253 = vmatpush1.msra.mxu0 %v2227
    %2254 = vmatprep.subr.mxu0 0.0
    %2255 = vmatpush1.msra.mxu0 %v2228
    %2256 = vmatprep.subr.mxu0 0.0
    %2257 = vmatpush1.msra.mxu0 %v2229
    %2258 = vmatprep.subr.mxu0 0.0
    %2259 = vmatpush1.msra.mxu0 %v2230
    %2260 = vmatprep.subr.mxu0 0.0
    %2261 = vmatpush1.msra.mxu0 %v2231
    %2262 = vmatprep.subr.mxu0 0.0
    %2263 = vmatpush1.msra.mxu0 %v2232
    %2264 = vmatprep.subr.mxu0 0.0
    %2265 = vmatpush1.msra.mxu0 %v2233
    %2266 = vmatprep.subr.mxu0 0.0
    %2267 = vmatpush1.msra.mxu0 %v2234
    %2268 = vmatprep.subr.mxu0 0.0
    %2269 = vmatpush1.msra.mxu0 %v2235
    %2270 = vmatprep.subr.mxu0 0.0
    %2271 = vmatpush1.msra.mxu0 %v2236
    %2272 = vmatprep.subr.mxu0 0.0
    %2273 = vmatpush1.msra.mxu0 %v2237
    %2274 = vmatprep.subr.mxu0 0.0
    %2275 = vmatpush1.msra.mxu0 %v2238
    %2276 = vmatprep.subr.mxu0 0.0
    %2277 = vmatpush1.msra.mxu0 %v2239
    %2278 = vmatprep.subr.mxu0 0.0
    %2279 = vmatpush1.msra.mxu0 %v2240
    %2280 = vmatprep.subr.mxu0 0.0
    %2281 = vmatpush1.msra.mxu0 0.0
    %2282 = vmatprep.subr.mxu0 0.0
    %2283 = vmatpush1.msra.mxu0 0.0
    %2284 = vmatprep.subr.mxu0 0.0
    %2285 = vmatpush1.msra.mxu0 0.0
    %2286 = vmatprep.subr.mxu0 0.0
    %2287 = vmatpush1.msra.mxu0 0.0
    %2288 = vmatprep.subr.mxu0 0.0
    %2289 = vmatpush1.msra.mxu0 0.0
    %2290 = vmatprep.subr.mxu0 0.0
    %2291 = vmatpush1.msra.mxu0 0.0
    %2292 = vmatprep.subr.mxu0 0.0
    %2293 = vmatpush1.msra.mxu0 0.0
    %2294 = vmatprep.subr.mxu0 0.0
    %2295 = vmatpush1.msra.mxu0 0.0
    %2296 = vmatprep.subr.mxu0 0.0
    %2297 = vmatpush1.msra.mxu0 0.0
    %2298 = vmatprep.subr.mxu0 0.0
    %2299 = vmatpush1.msra.mxu0 0.0
    %2300 = vmatprep.subr.mxu0 0.0
    %2301 = vmatpush1.msra.mxu0 0.0
    %2302 = vmatprep.subr.mxu0 0.0
    %2303 = vmatpush1.msra.mxu0 0.0
    %2304 = vmatprep.subr.mxu0 0.0
    %2305 = vmatpush1.msra.mxu0 0.0
    %2306 = vmatprep.subr.mxu0 0.0
    %2307 = vmatpush1.msra.mxu0 0.0
    %2308 = vmatprep.subr.mxu0 0.0
    %2309 = vmatpush1.msra.mxu0 0.0
    %2310 = vmatprep.subr.mxu0 0.0
    %2311 = vmatpush1.msra.mxu0 0.0
    %2312 = vmatprep.mubr.f32.mxu0 0.0
    %2313 = vmatmul.mubr.f32.gmra.mrb[0].mxu0 %v2217
    %v2314 = vpop.f32.mrb[0].mxu0
    %v2315 = vadd.f32 %v2246, %v2314
    %v2316 = vpop.f32.mrb[0].mxu0
    %2317 = vmatprep.mubr.f32.mxu0 0.0
    %2318 = vmatmul.mubr.f32.gmra.mrb[0].mxu0 %v2218
    %v2319 = vpop.f32.mrb[0].mxu0
    %v2320 = vadd.f32 %v2246, %v2319
    %v2321 = vpop.f32.mrb[0].mxu0
    %2322 = vmatprep.mubr.f32.mxu0 0.0
    %2323 = vmatmul.mubr.f32.gmra.mrb[0].mxu0 %v2219
    %v2324 = vpop.f32.mrb[0].mxu0
    %v2325 = vadd.f32 %v2246, %v2324
    %v2326 = vpop.f32.mrb[0].mxu0
    %2327 = vmatprep.mubr.f32.mxu0 0.0
    %2328 = vmatmul.mubr.f32.gmra.mrb[0].mxu0 %v2220
    %v2329 = vpop.f32.mrb[0].mxu0
    %v2330 = vadd.f32 %v2246, %v2329
    %v2331 = vpop.f32.mrb[0].mxu0
    %2332 = vmatprep.mubr.f32.mxu0 0.0
    %2333 = vmatmul.mubr.f32.gmra.mrb[0].mxu0 %v2221
    %v2334 = vpop.f32.mrb[0].mxu0
    %v2335 = vadd.f32 %v2246, %v2334
    %v2336 = vpop.f32.mrb[0].mxu0
    %2337 = vmatprep.mubr.f32.mxu0 0.0
    %2338 = vmatmul.mubr.f32.gmra.mrb[0].mxu0 %v2222
    %v2339 = vpop.f32.mrb[0].mxu0
    %v2340 = vadd.f32 %v2246, %v2339
    %v2341 = vpop.f32.mrb[0].mxu0
    %2342 = vmatprep.mubr.f32.mxu0 0.0
    %2343 = vmatmul.mubr.f32.gmra.mrb[0].mxu0 %v2223
    %v2344 = vpop.f32.mrb[0].mxu0
    %v2345 = vadd.f32 %v2246, %v2344
    %v2346 = vpop.f32.mrb[0].mxu0
    %2347 = vmatprep.mubr.f32.mxu0 0.0
    %2348 = vmatmul.mubr.f32.gmra.mrb[0].mxu0 %v2224
    %v2349 = vpop.f32.mrb[0].mxu0
    %v2350 = vadd.f32 %v2246, %v2349
    %v2351 = vpop.f32.mrb[0].mxu0
    %2352 = vdwg.mxu0
    %2353 = vst [vmem:[#allocation8] sm:$0xff] %v2315
    %2354 = vst [vmem:[#allocation8 + $0x8] sm:$0xff] %v2320
    %2355 = vst [vmem:[#allocation8 + $0x10] sm:$0xff] %v2325
    %2356 = vst [vmem:[#allocation8 + $0x18] sm:$0xff] %v2330
    %2357 = vst [vmem:[#allocation8 + $0x20] sm:$0xff] %v2335
    %2358 = vst [vmem:[#allocation8 + $0x28] sm:$0xff] %v2340
    %2359 = vst [vmem:[#allocation8 + $0x30] sm:$0xff] %v2345
    %2360 = vst [vmem:[#allocation8 + $0x38] sm:$0xff] %v2350
    // Predicated region
    $region34: #{tpu_custom_call.1} parent=1 // pred_check
      _
    $region35: #{tpu_custom_call.1} parent=1 // pred_check_branch
      %2362 = sbr.rel (0) target = $region37
    $region36: #{tpu_custom_call.1} parent=1 // pred_region
      %s2364 = ssub.s32 1024, 1024
      %2365 = vsyncadd [#allocation5], %s2364
      %s2366 = sshll.u32 [#allocation8], 4
      %s2367 = int_to_ptr.vmem [resolvable:$true] %s2366
      %2372 = dma.vmem_to_hbm [thread:$0]  %s2367, 1024, %s6, [#allocation5], 128, 128, 8
    $region37: #{tpu_custom_call.1} parent=1 // pred_fallthru
      _
    // Predicated region
    $region38: #{tpu_custom_call.1} parent=1 // pred_check
      _
    $region39: #{tpu_custom_call.1} parent=1 // pred_check_branch
      %2374 = sbr.rel (0) target = $region41
    $region40: #{tpu_custom_call.1} parent=1 // pred_region
      %2375 = dma.done [#allocation5], 1024
    $region41: #{tpu_custom_call.1} parent=1 // pred_fallthru
      _
    %2376 = vsyncpa [#allocation4], 1
    %2377 = vsyncpa [#allocation7], 1
    %2378 = vsyncpa [#allocation5], 1

</llo_original>
